<compile_context>
chip_gen: v7x
topology: tpu7x:2x2x1
jax: 0.10.0
libtpu: 0.0.40
codegen_flags: <defaults>
</compile_context>

<pallas_src>
import functools

import jax
import jax.numpy as jnp
from jax.experimental import pallas as pl
from jax.experimental.pallas import tpu as pltpu

EPS = 1e-5


def _conv_bn_kernel(x_ref, w_ref, g_ref, b_ref, o_ref, *, compute_dtype):
    # x_ref: (N, Cin, HW)  f32       -- full input, resident across grid steps
    # w_ref: (Cb, Cin)     bf16/f32  -- this step's slice of the 1x1 conv weight
    # g_ref, b_ref: (Cb,1) f32       -- BN gamma / beta slice
    # o_ref: (N, Cb, HW)   f32       -- this step's slice of the NCHW output
    n_batch, _, hw = x_ref.shape
    cb = w_ref.shape[0]

    w = w_ref[...].astype(compute_dtype)  # single-pass MXU operand (bf16 default)

    # Pass 1: 1x1 conv == per-sample matmul; write y into o_ref, accumulate sum.
    y_sum = jnp.zeros((cb, 1), jnp.float32)
    for n in range(n_batch):  # static, tiny batch (N=1 for this module)
        y = jnp.dot(w, x_ref[n].astype(compute_dtype),
                    preferred_element_type=jnp.float32)        # (Cb, HW) f32
        o_ref[n] = y
        y_sum = y_sum + jnp.sum(y, axis=1, keepdims=True)

    inv_count = 1.0 / float(n_batch * hw)
    mean = y_sum * inv_count                                   # (Cb, 1)

    # Pass 2: centered (two-pass) variance -- no cancellation for large means.
    var_sum = jnp.zeros((cb, 1), jnp.float32)
    for n in range(n_batch):
        d = o_ref[n] - mean
        var_sum = var_sum + jnp.sum(d * d, axis=1, keepdims=True)
    var = var_sum * inv_count
    inv_std = jax.lax.rsqrt(var + EPS)
    scale = g_ref[...] * inv_std                               # (Cb, 1)
    shift = b_ref[...] - mean * scale                          # (Cb, 1)

    # Pass 3: apply BN in place.
    for n in range(n_batch):
        o_ref[n] = (o_ref[n] * scale + shift).astype(o_ref.dtype)

    # TODO(synk): training-mode BatchNorm also updates running_mean/running_var
    # in place; only the forward activation is produced here.


def _round_up(v, m):
    return (v + m - 1) // m * m


def _default_cout_splits():
    """2 where one JAX device exposes two TensorCores that a "parallel" grid
    axis can shard across (v4/v5p megacore, v7x); 1 on v2/v3/v5e/v6e.
    Misdetection only changes performance -- the split grid is always correct."""
    try:
        kind = jax.devices()[0].device_kind.lower()
    except Exception:
        return 1
    if any(t in kind for t in ("lite", "v5e", "v6", "v2", "v3")):
        return 1
    if any(t in kind for t in ("v4", "v5", "7")):
        return 2
    return 1


def conv2d_1x1_batchnorm(x_nchw, weight_oihw, gamma, beta, *,
                         compute_dtype=jnp.bfloat16,
                         weight_dtype=jnp.bfloat16,
                         cout_splits=None):
    """x_nchw: (N, Cin, H, W); weight_oihw: (Cout, Cin, 1, 1). Returns NCHW f32."""
    N, Cin, H, W = x_nchw.shape
    Cout = weight_oihw.shape[0]
    HW = H * W

    if cout_splits is None:
        cout_splits = _default_cout_splits()
    cb = _round_up(-(-Cout // cout_splits), 8)   # per-step Cout block (sublane-aligned)
    cout_pad = cb * cout_splits

    # Pure reshapes (contiguous views) -- no transposes anywhere.
    x3 = x_nchw.reshape(N, Cin, HW)
    w2 = weight_oihw.reshape(Cout, Cin).astype(weight_dtype)   # bf16 in HBM by default
    g2 = gamma.reshape(Cout, 1).astype(jnp.float32)
    b2 = beta.reshape(Cout, 1).astype(jnp.float32)
    if cout_pad != Cout:
        pad = ((0, cout_pad - Cout), (0, 0))
        w2, g2, b2 = jnp.pad(w2, pad), jnp.pad(g2, pad), jnp.pad(b2, pad)

    kernel = functools.partial(_conv_bn_kernel, compute_dtype=compute_dtype)
    y3 = pl.pallas_call(
        kernel,
        out_shape=jax.ShapeDtypeStruct((N, cout_pad, HW), jnp.float32),
        grid=(cout_splits,),
        in_specs=[
            pl.BlockSpec((N, Cin, HW), lambda i: (0, 0, 0)),   # same block every step
            pl.BlockSpec((cb, Cin), lambda i: (i, 0)),
            pl.BlockSpec((cb, 1), lambda i: (i, 0)),
            pl.BlockSpec((cb, 1), lambda i: (i, 0)),
        ],
        out_specs=pl.BlockSpec((N, cb, HW), lambda i: (0, i, 0)),
        compiler_params=pltpu.CompilerParams(
            dimension_semantics=("parallel",)),
    )(x3, w2, g2, b2)

    return y3[:, :Cout, :].reshape(N, Cout, H, W)


def reference(x_nchw, weight_oihw, gamma, beta):
    """Pure-JAX f32 reference of Conv2d(1x1, no bias) + BatchNorm2d (training)."""
    N, Cin, H, W = x_nchw.shape
    Cout = weight_oihw.shape[0]
    x2d = jnp.transpose(x_nchw, (0, 2, 3, 1)).reshape(-1, Cin)
    w = weight_oihw.reshape(Cout, Cin)
    y = jnp.dot(x2d, w.T, precision=jax.lax.Precision.HIGHEST)
    mean = jnp.mean(y, axis=0, keepdims=True)
    var = jnp.mean((y - mean) ** 2, axis=0, keepdims=True)
    y = (y - mean) / jnp.sqrt(var + EPS) * gamma[None, :] + beta[None, :]
    return jnp.transpose(y.reshape(N, H, W, Cout), (0, 3, 1, 2))


if __name__ == "__main__":
    # Shapes implied by the module: x = (1, 1392, 7, 7), weight = (232, 1392, 1, 1)
    N, Cin, Cout, H, W = 1, 1392, 232, 7, 7

    key = jax.random.PRNGKey(0)
    kx, kw, kg, kb = jax.random.split(key, 4)

    x = jax.random.normal(kx, (N, Cin, H, W), dtype=jnp.float32)
    weight = jax.random.normal(kw, (Cout, Cin, 1, 1), dtype=jnp.float32) * 0.02
    gamma = 1.0 + 0.1 * jax.random.normal(kg, (Cout,), dtype=jnp.float32)
    beta = 0.1 * jax.random.normal(kb, (Cout,), dtype=jnp.float32)

    ref = jax.block_until_ready(reference(x, weight, gamma, beta))

    # 1) Exact path, single block: f32 weights + multi-pass f32 MXU, tight check.
    out_f32 = jax.block_until_ready(conv2d_1x1_batchnorm(
        x, weight, gamma, beta,
        compute_dtype=jnp.float32, weight_dtype=jnp.float32, cout_splits=1))
    assert out_f32.shape == (N, Cout, H, W), out_f32.shape
    assert jnp.allclose(out_f32, ref, atol=1e-3, rtol=1e-3), \
        float(jnp.max(jnp.abs(out_f32 - ref)))

    # 2) Dual-TensorCore Cout-split path (padded 232 -> 240), exact dtypes.
    out_split = jax.block_until_ready(conv2d_1x1_batchnorm(
        x, weight, gamma, beta,
        compute_dtype=jnp.float32, weight_dtype=jnp.float32, cout_splits=2))
    assert out_split.shape == (N, Cout, H, W), out_split.shape
    assert jnp.allclose(out_split, ref, atol=1e-3, rtol=1e-3), \
        float(jnp.max(jnp.abs(out_split - ref)))

    # 3) Default fast path: bf16 weight in HBM + single-pass bf16 MXU (f32 acc).
    #    BN's per-channel renormalization absorbs the systematic quantization
    #    error; the residual per-element noise sits well inside 2e-2.
    out = jax.block_until_ready(conv2d_1x1_batchnorm(x, weight, gamma, beta))
    assert out.shape == (N, Cout, H, W), out.shape
    assert jnp.allclose(out, ref, atol=2e-2, rtol=2e-2), \
        float(jnp.max(jnp.abs(out - ref)))

    print("KERNEL_OK")
</pallas_src>

<mosaic_0001>
module attributes {stable_mosaic.version = 11 : i64} {
  func.func @_conv_bn_kernel(%arg0: i32, %arg1: memref<1x1392x49xf32, #tpu.memory_space<vmem>>, %arg2: memref<232x1392xf32, #tpu.memory_space<vmem>>, %arg3: memref<232x1xf32, #tpu.memory_space<vmem>>, %arg4: memref<232x1xf32, #tpu.memory_space<vmem>>, %arg5: memref<1x232x49xf32, #tpu.memory_space<vmem>>) attributes {dimension_semantics = [#tpu.dimension_semantics<parallel>], iteration_bounds = array<i64: 1>, scalar_prefetch = 0 : i64, scratch_operands = 0 : i64, tpu.core_type = #tpu.core_type<tc>, window_params = [{pipeline_mode = #tpu.pipeline_mode<synchronous>, transform_indices = @transform_0, window_bounds = array<i64: 1, 1392, 49>}, {transform_indices = @transform_1, window_bounds = array<i64: 232, 1392>}, {transform_indices = @transform_2, window_bounds = array<i64: 232, 1>}, {transform_indices = @transform_3, window_bounds = array<i64: 232, 1>}, {transform_indices = @transform_4, window_bounds = array<i64: 1, 232, 49>}]} {
    %c0 = arith.constant 0 : index
    %c0_0 = arith.constant 0 : index
    %0 = vector.load %arg2[%c0, %c0_0] : memref<232x1392xf32, #tpu.memory_space<vmem>>, vector<232x1392xf32>
    %cst = arith.constant 0.000000e+00 : f32
    %1 = vector.broadcast %cst : f32 to vector<232x1xf32>
    %c0_1 = arith.constant 0 : index
    %c0_2 = arith.constant 0 : index
    %c0_3 = arith.constant 0 : index
    %2 = vector.load %arg1[%c0_1, %c0_2, %c0_3] : memref<1x1392x49xf32, #tpu.memory_space<vmem>>, vector<1x1392x49xf32>
    %3 = vector.shape_cast %2 : vector<1x1392x49xf32> to vector<1392x49xf32>
    %cst_4 = arith.constant dense<0.000000e+00> : vector<232x49xf32>
    %4 = tpu.matmul %0, %3, %cst_4 {dimension_numbers = #tpu.dot_dimension_numbers<[1], [0], [0], [1], [0, 0, 1, 1], [], []>} : vector<232x1392xf32>, vector<1392x49xf32>, vector<232x49xf32> -> vector<232x49xf32>
    %c0_5 = arith.constant 0 : index
    %c0_6 = arith.constant 0 : index
    %c0_7 = arith.constant 0 : index
    %5 = vector.load %arg5[%c0_5, %c0_6, %c0_7] : memref<1x232x49xf32, #tpu.memory_space<vmem>>, vector<1x232x49xf32>
    %6 = vector.shape_cast %5 : vector<1x232x49xf32> to vector<232x49xf32>
    %7 = vector.shape_cast %4 : vector<232x49xf32> to vector<1x232x49xf32>
    tpu.vector_store %arg5[%c0_5, %c0_6, %c0_7], %7 {strides = array<i32>} : memref<1x232x49xf32, #tpu.memory_space<vmem>>, vector<1x232x49xf32>,
    %cst_8 = arith.constant dense<0.000000e+00> : vector<232xf32>
    %8 = vector.multi_reduction <add>, %4, %cst_8 [1] : vector<232x49xf32> to vector<232xf32>
    %9 = vector.shape_cast %8 : vector<232xf32> to vector<232x1xf32>
    %10 = arith.addf %1, %9 : vector<232x1xf32>
    %cst_9 = arith.constant 0.0204081628 : f32
    %11 = vector.broadcast %cst_9 : f32 to vector<232x1xf32>
    %12 = arith.mulf %10, %11 : vector<232x1xf32>
    %cst_10 = arith.constant 0.000000e+00 : f32
    %13 = vector.broadcast %cst_10 : f32 to vector<232x1xf32>
    %c0_11 = arith.constant 0 : index
    %c0_12 = arith.constant 0 : index
    %c0_13 = arith.constant 0 : index
    %14 = vector.load %arg5[%c0_11, %c0_12, %c0_13] : memref<1x232x49xf32, #tpu.memory_space<vmem>>, vector<1x232x49xf32>
    %15 = vector.shape_cast %14 : vector<1x232x49xf32> to vector<232x49xf32>
    %16 = vector.broadcast %12 : vector<232x1xf32> to vector<232x49xf32>
    %17 = arith.subf %15, %16 : vector<232x49xf32>
    %18 = arith.mulf %17, %17 : vector<232x49xf32>
    %cst_14 = arith.constant dense<0.000000e+00> : vector<232xf32>
    %19 = vector.multi_reduction <add>, %18, %cst_14 [1] : vector<232x49xf32> to vector<232xf32>
    %20 = vector.shape_cast %19 : vector<232xf32> to vector<232x1xf32>
    %21 = arith.addf %13, %20 : vector<232x1xf32>
    %cst_15 = arith.constant 0.0204081628 : f32
    %22 = vector.broadcast %cst_15 : f32 to vector<232x1xf32>
    %23 = arith.mulf %21, %22 : vector<232x1xf32>
    %cst_16 = arith.constant 9.99999974E-6 : f32
    %24 = vector.broadcast %cst_16 : f32 to vector<232x1xf32>
    %25 = arith.addf %23, %24 : vector<232x1xf32>
    %26 = math.rsqrt %25 : vector<232x1xf32>
    %c0_17 = arith.constant 0 : index
    %c0_18 = arith.constant 0 : index
    %27 = vector.load %arg3[%c0_17, %c0_18] : memref<232x1xf32, #tpu.memory_space<vmem>>, vector<232x1xf32>
    %28 = arith.mulf %27, %26 : vector<232x1xf32>
    %c0_19 = arith.constant 0 : index
    %c0_20 = arith.constant 0 : index
    %29 = vector.load %arg4[%c0_19, %c0_20] : memref<232x1xf32, #tpu.memory_space<vmem>>, vector<232x1xf32>
    %30 = arith.mulf %12, %28 : vector<232x1xf32>
    %31 = arith.subf %29, %30 : vector<232x1xf32>
    %c0_21 = arith.constant 0 : index
    %c0_22 = arith.constant 0 : index
    %c0_23 = arith.constant 0 : index
    %32 = vector.load %arg5[%c0_21, %c0_22, %c0_23] : memref<1x232x49xf32, #tpu.memory_space<vmem>>, vector<1x232x49xf32>
    %33 = vector.shape_cast %32 : vector<1x232x49xf32> to vector<232x49xf32>
    %34 = vector.broadcast %28 : vector<232x1xf32> to vector<232x49xf32>
    %35 = arith.mulf %33, %34 : vector<232x49xf32>
    %36 = vector.broadcast %31 : vector<232x1xf32> to vector<232x49xf32>
    %37 = arith.addf %35, %36 : vector<232x49xf32>
    %c0_24 = arith.constant 0 : index
    %c0_25 = arith.constant 0 : index
    %c0_26 = arith.constant 0 : index
    %38 = vector.load %arg5[%c0_24, %c0_25, %c0_26] : memref<1x232x49xf32, #tpu.memory_space<vmem>>, vector<1x232x49xf32>
    %39 = vector.shape_cast %38 : vector<1x232x49xf32> to vector<232x49xf32>
    %40 = vector.shape_cast %37 : vector<232x49xf32> to vector<1x232x49xf32>
    tpu.vector_store %arg5[%c0_24, %c0_25, %c0_26], %40 {strides = array<i32>} : memref<1x232x49xf32, #tpu.memory_space<vmem>>, vector<1x232x49xf32>,
    return
  }
  func.func @transform_0(%arg0: i32) -> (i32, i32, i32) {
    %c0_i32 = arith.constant 0 : i32
    %c0_i32_0 = arith.constant 0 : i32
    %c0_i32_1 = arith.constant 0 : i32
    %c0_i32_2 = arith.constant 0 : i32
    return %c0_i32, %c0_i32_0, %c0_i32_1 : i32, i32, i32
  }
  func.func @transform_1(%arg0: i32) -> (i32, i32) {
    %c0_i32 = arith.constant 0 : i32
    %c0_i32_0 = arith.constant 0 : i32
    return %arg0, %c0_i32 : i32, i32
  }
  func.func @transform_2(%arg0: i32) -> (i32, i32) {
    %c0_i32 = arith.constant 0 : i32
    %c0_i32_0 = arith.constant 0 : i32
    return %arg0, %c0_i32 : i32, i32
  }
  func.func @transform_3(%arg0: i32) -> (i32, i32) {
    %c0_i32 = arith.constant 0 : i32
    %c0_i32_0 = arith.constant 0 : i32
    return %arg0, %c0_i32 : i32, i32
  }
  func.func @transform_4(%arg0: i32) -> (i32, i32, i32) {
    %c0_i32 = arith.constant 0 : i32
    %c0_i32_0 = arith.constant 0 : i32
    %c0_i32_1 = arith.constant 0 : i32
    return %c0_i32, %arg0, %c0_i32_0 : i32, i32, i32
  }
}

</mosaic_0001>

<llo_original>
// kernel: tpu_custom_call.1
$region0: #{tpu_custom_call.1}
  #allocation0 [shape = 'u32[]', space=smem, size = 0x4, offset = 0x4, fixed_abs, tag = 'smem constant byte address 0x4 - core index']
  #allocation1 [shape = 'u32[144,128]{1,0:T(1,128)}', space=vmem, size = 0x12000, scoped, tag = 'internal scratch']
  %s0 = inlined_call_operand.vmem [shape: f32[1,1392,49], index: 0, kind: input, shape index: {}]
  %s1 = inlined_call_operand.hbm [shape: f32[232,1392], index: 1, kind: input, shape index: {}]
  %s2 = inlined_call_operand.vmem [shape: f32[232,1], index: 2, kind: input, shape index: {}]
  %s3 = inlined_call_operand.vmem [shape: f32[232,1], index: 3, kind: input, shape index: {}]
  %s4 = inlined_call_operand.vmem [shape: f32[1,232,49], index: 4, kind: output, shape index: {}]
  %s5 = sld [smem:[#allocation0]]
  $region30: #{tpu_custom_call.1} parent=0
    _
  %s7 = ssub.s32 1, %s5
  %s8 = scalar_select 0, %s7, %s5
  $region1: #{tpu_custom_call.1} parent=0
    #allocation2 [shape = 'u8[1306624]{0}', space=vmem, size = 0x13f000, scoped, tag = 'input window, operand 1, single buffered']
    #allocation3 [shape = 's32[1]{0}', space=sflag, size = 0x4, scoped, tag = 'scoped memory for tpu_custom_call.1']
    %9 = vsyncpa [#allocation3], 0
    // Predicated region
    $region2: #{tpu_custom_call.1} parent=1 // pred_check
      _
    $region3: #{tpu_custom_call.1} parent=1 // pred_check_branch
      %11 = sbr.rel (0) target = $region5
    $region4: #{tpu_custom_call.1} parent=1 // pred_region
      _
    $region5: #{tpu_custom_call.1} parent=1 // pred_fallthru
      _
    // Predicated region
    $region6: #{tpu_custom_call.1} parent=1 // pred_check
      _
    $region7: #{tpu_custom_call.1} parent=1 // pred_check_branch
      %13 = sbr.rel (0) target = $region9
    $region8: #{tpu_custom_call.1} parent=1 // pred_region
      %s15 = ssub.s32 40832, 40832
      %16 = vsyncadd [#allocation3], %s15
      %s17 = sshll.u32 [#allocation2], 4
      %s18 = int_to_ptr.vmem [resolvable:$true] %s17
      %23 = dma.hbm_to_vmem [thread:$0]  %s1, 40832, %s18, [#allocation3], 1408, 1408, 88
    $region9: #{tpu_custom_call.1} parent=1 // pred_fallthru
      _
    // Predicated region
    $region10: #{tpu_custom_call.1} parent=1 // pred_check
      _
    $region11: #{tpu_custom_call.1} parent=1 // pred_check_branch
      %25 = sbr.rel (0) target = $region13
    $region12: #{tpu_custom_call.1} parent=1 // pred_region
      _
    $region13: #{tpu_custom_call.1} parent=1 // pred_fallthru
      _
    // Predicated region
    $region14: #{tpu_custom_call.1} parent=1 // pred_check
      _
    $region15: #{tpu_custom_call.1} parent=1 // pred_check_branch
      %27 = sbr.rel (0) target = $region17
    $region16: #{tpu_custom_call.1} parent=1 // pred_region
      _
    $region17: #{tpu_custom_call.1} parent=1 // pred_fallthru
      _
    // Predicated region
    $region18: #{tpu_custom_call.1} parent=1 // pred_check
      _
    $region19: #{tpu_custom_call.1} parent=1 // pred_check_branch
      %29 = sbr.rel (0) target = $region21
    $region20: #{tpu_custom_call.1} parent=1 // pred_region
      %30 = dma.done [#allocation3], 40832
    $region21: #{tpu_custom_call.1} parent=1 // pred_fallthru
      _
    %v31 = vld [vmem:[#allocation2] sm:$0xff]
    %v32 = vld [vmem:[#allocation2 + $0x8] sm:$0xff]
    %v33 = vld [vmem:[#allocation2 + $0x10] sm:$0xff]
    %v34 = vld [vmem:[#allocation2 + $0x18] sm:$0xff]
    %v35 = vld [vmem:[#allocation2 + $0x20] sm:$0xff]
    %v36 = vld [vmem:[#allocation2 + $0x28] sm:$0xff]
    %v37 = vld [vmem:[#allocation2 + $0x30] sm:$0xff]
    %v38 = vld [vmem:[#allocation2 + $0x38] sm:$0xff]
    %v39 = vld [vmem:[#allocation2 + $0x40] sm:$0xff]
    %v40 = vld [vmem:[#allocation2 + $0x48] sm:$0xff]
    %v41 = vld [vmem:[#allocation2 + $0x50] sm:$0xff]
    %v42 = vld [vmem:[#allocation2 + $0x58] sm:$0xff]
    %v43 = vld [vmem:[#allocation2 + $0x60] sm:$0xff]
    %v44 = vld [vmem:[#allocation2 + $0x68] sm:$0xff]
    %v45 = vld [vmem:[#allocation2 + $0x70] sm:$0xff]
    %v46 = vld [vmem:[#allocation2 + $0x78] sm:$0xff]
    %v47 = vld [vmem:[#allocation2 + $0x80] sm:$0xff]
    %v48 = vld [vmem:[#allocation2 + $0x88] sm:$0xff]
    %v49 = vld [vmem:[#allocation2 + $0x90] sm:$0xff]
    %v50 = vld [vmem:[#allocation2 + $0x98] sm:$0xff]
    %v51 = vld [vmem:[#allocation2 + $0xa0] sm:$0xff]
    %v52 = vld [vmem:[#allocation2 + $0xa8] sm:$0xff]
    %v53 = vld [vmem:[#allocation2 + $0xb0] sm:$0xff]
    %v54 = vld [vmem:[#allocation2 + $0xb8] sm:$0xff]
    %v55 = vld [vmem:[#allocation2 + $0xc0] sm:$0xff]
    %v56 = vld [vmem:[#allocation2 + $0xc8] sm:$0xff]
    %v57 = vld [vmem:[#allocation2 + $0xd0] sm:$0xff]
    %v58 = vld [vmem:[#allocation2 + $0xd8] sm:$0xff]
    %v59 = vld [vmem:[#allocation2 + $0xe0] sm:$0xff]
    %v60 = vld [vmem:[#allocation2 + $0xe8] sm:$0xff]
    %v61 = vld [vmem:[#allocation2 + $0xf0] sm:$0xff]
    %v62 = vld [vmem:[#allocation2 + $0xf8] sm:$0xff]
    %v63 = vld [vmem:[#allocation2 + $0x100] sm:$0xff]
    %v64 = vld [vmem:[#allocation2 + $0x108] sm:$0xff]
    %v65 = vld [vmem:[#allocation2 + $0x110] sm:$0xff]
    %v66 = vld [vmem:[#allocation2 + $0x118] sm:$0xff]
    %v67 = vld [vmem:[#allocation2 + $0x120] sm:$0xff]
    %v68 = vld [vmem:[#allocation2 + $0x128] sm:$0xff]
    %v69 = vld [vmem:[#allocation2 + $0x130] sm:$0xff]
    %v70 = vld [vmem:[#allocation2 + $0x138] sm:$0xff]
    %v71 = vld [vmem:[#allocation2 + $0x140] sm:$0xff]
    %v72 = vld [vmem:[#allocation2 + $0x148] sm:$0xff]
    %v73 = vld [vmem:[#allocation2 + $0x150] sm:$0xff]
    %v74 = vld [vmem:[#allocation2 + $0x158] sm:$0xff]
    %v75 = vld [vmem:[#allocation2 + $0x160] sm:$0xff]
    %v76 = vld [vmem:[#allocation2 + $0x168] sm:$0xff]
    %v77 = vld [vmem:[#allocation2 + $0x170] sm:$0xff]
    %v78 = vld [vmem:[#allocation2 + $0x178] sm:$0xff]
    %v79 = vld [vmem:[#allocation2 + $0x180] sm:$0xff]
    %v80 = vld [vmem:[#allocation2 + $0x188] sm:$0xff]
    %v81 = vld [vmem:[#allocation2 + $0x190] sm:$0xff]
    %v82 = vld [vmem:[#allocation2 + $0x198] sm:$0xff]
    %v83 = vld [vmem:[#allocation2 + $0x1a0] sm:$0xff]
    %v84 = vld [vmem:[#allocation2 + $0x1a8] sm:$0xff]
    %v85 = vld [vmem:[#allocation2 + $0x1b0] sm:$0xff]
    %v86 = vld [vmem:[#allocation2 + $0x1b8] sm:$0xff]
    %v87 = vld [vmem:[#allocation2 + $0x1c0] sm:$0xff]
    %v88 = vld [vmem:[#allocation2 + $0x1c8] sm:$0xff]
    %v89 = vld [vmem:[#allocation2 + $0x1d0] sm:$0xff]
    %v90 = vld [vmem:[#allocation2 + $0x1d8] sm:$0xff]
    %v91 = vld [vmem:[#allocation2 + $0x1e0] sm:$0xff]
    %v92 = vld [vmem:[#allocation2 + $0x1e8] sm:$0xff]
    %v93 = vld [vmem:[#allocation2 + $0x1f0] sm:$0xff]
    %v94 = vld [vmem:[#allocation2 + $0x1f8] sm:$0xff]
    %v95 = vld [vmem:[#allocation2 + $0x200] sm:$0xff]
    %v96 = vld [vmem:[#allocation2 + $0x208] sm:$0xff]
    %v97 = vld [vmem:[#allocation2 + $0x210] sm:$0xff]
    %v98 = vld [vmem:[#allocation2 + $0x218] sm:$0xff]
    %v99 = vld [vmem:[#allocation2 + $0x220] sm:$0xff]
    %v100 = vld [vmem:[#allocation2 + $0x228] sm:$0xff]
    %v101 = vld [vmem:[#allocation2 + $0x230] sm:$0xff]
    %v102 = vld [vmem:[#allocation2 + $0x238] sm:$0xff]
    %v103 = vld [vmem:[#allocation2 + $0x240] sm:$0xff]
    %v104 = vld [vmem:[#allocation2 + $0x248] sm:$0xff]
    %v105 = vld [vmem:[#allocation2 + $0x250] sm:$0xff]
    %v106 = vld [vmem:[#allocation2 + $0x258] sm:$0xff]
    %v107 = vld [vmem:[#allocation2 + $0x260] sm:$0xff]
    %v108 = vld [vmem:[#allocation2 + $0x268] sm:$0xff]
    %v109 = vld [vmem:[#allocation2 + $0x270] sm:$0xff]
    %v110 = vld [vmem:[#allocation2 + $0x278] sm:$0xff]
    %v111 = vld [vmem:[#allocation2 + $0x280] sm:$0xff]
    %v112 = vld [vmem:[#allocation2 + $0x288] sm:$0xff]
    %v113 = vld [vmem:[#allocation2 + $0x290] sm:$0xff]
    %v114 = vld [vmem:[#allocation2 + $0x298] sm:$0xff]
    %v115 = vld [vmem:[#allocation2 + $0x2a0] sm:$0xff]
    %v116 = vld [vmem:[#allocation2 + $0x2a8] sm:$0xff]
    %v117 = vld [vmem:[#allocation2 + $0x2b0] sm:$0xff]
    %v118 = vld [vmem:[#allocation2 + $0x2b8] sm:$0xff]
    %v119 = vld [vmem:[#allocation2 + $0x2c0] sm:$0xff]
    %v120 = vld [vmem:[#allocation2 + $0x2c8] sm:$0xff]
    %v121 = vld [vmem:[#allocation2 + $0x2d0] sm:$0xff]
    %v122 = vld [vmem:[#allocation2 + $0x2d8] sm:$0xff]
    %v123 = vld [vmem:[#allocation2 + $0x2e0] sm:$0xff]
    %v124 = vld [vmem:[#allocation2 + $0x2e8] sm:$0xff]
    %v125 = vld [vmem:[#allocation2 + $0x2f0] sm:$0xff]
    %v126 = vld [vmem:[#allocation2 + $0x2f8] sm:$0xff]
    %v127 = vld [vmem:[#allocation2 + $0x300] sm:$0xff]
    %v128 = vld [vmem:[#allocation2 + $0x308] sm:$0xff]
    %v129 = vld [vmem:[#allocation2 + $0x310] sm:$0xff]
    %v130 = vld [vmem:[#allocation2 + $0x318] sm:$0xff]
    %v131 = vld [vmem:[#allocation2 + $0x320] sm:$0xff]
    %v132 = vld [vmem:[#allocation2 + $0x328] sm:$0xff]
    %v133 = vld [vmem:[#allocation2 + $0x330] sm:$0xff]
    %v134 = vld [vmem:[#allocation2 + $0x338] sm:$0xff]
    %v135 = vld [vmem:[#allocation2 + $0x340] sm:$0xff]
    %v136 = vld [vmem:[#allocation2 + $0x348] sm:$0xff]
    %v137 = vld [vmem:[#allocation2 + $0x350] sm:$0xff]
    %v138 = vld [vmem:[#allocation2 + $0x358] sm:$0xff]
    %v139 = vld [vmem:[#allocation2 + $0x360] sm:$0xff]
    %v140 = vld [vmem:[#allocation2 + $0x368] sm:$0xff]
    %v141 = vld [vmem:[#allocation2 + $0x370] sm:$0xff]
    %v142 = vld [vmem:[#allocation2 + $0x378] sm:$0xff]
    %v143 = vld [vmem:[#allocation2 + $0x380] sm:$0xff]
    %v144 = vld [vmem:[#allocation2 + $0x388] sm:$0xff]
    %v145 = vld [vmem:[#allocation2 + $0x390] sm:$0xff]
    %v146 = vld [vmem:[#allocation2 + $0x398] sm:$0xff]
    %v147 = vld [vmem:[#allocation2 + $0x3a0] sm:$0xff]
    %v148 = vld [vmem:[#allocation2 + $0x3a8] sm:$0xff]
    %v149 = vld [vmem:[#allocation2 + $0x3b0] sm:$0xff]
    %v150 = vld [vmem:[#allocation2 + $0x3b8] sm:$0xff]
    %v151 = vld [vmem:[#allocation2 + $0x3c0] sm:$0xff]
    %v152 = vld [vmem:[#allocation2 + $0x3c8] sm:$0xff]
    %v153 = vld [vmem:[#allocation2 + $0x3d0] sm:$0xff]
    %v154 = vld [vmem:[#allocation2 + $0x3d8] sm:$0xff]
    %v155 = vld [vmem:[#allocation2 + $0x3e0] sm:$0xff]
    %v156 = vld [vmem:[#allocation2 + $0x3e8] sm:$0xff]
    %v157 = vld [vmem:[#allocation2 + $0x3f0] sm:$0xff]
    %v158 = vld [vmem:[#allocation2 + $0x3f8] sm:$0xff]
    %v159 = vld [vmem:[#allocation2 + $0x400] sm:$0xff]
    %v160 = vld [vmem:[#allocation2 + $0x408] sm:$0xff]
    %v161 = vld [vmem:[#allocation2 + $0x410] sm:$0xff]
    %v162 = vld [vmem:[#allocation2 + $0x418] sm:$0xff]
    %v163 = vld [vmem:[#allocation2 + $0x420] sm:$0xff]
    %v164 = vld [vmem:[#allocation2 + $0x428] sm:$0xff]
    %v165 = vld [vmem:[#allocation2 + $0x430] sm:$0xff]
    %v166 = vld [vmem:[#allocation2 + $0x438] sm:$0xff]
    %v167 = vld [vmem:[#allocation2 + $0x440] sm:$0xff]
    %v168 = vld [vmem:[#allocation2 + $0x448] sm:$0xff]
    %v169 = vld [vmem:[#allocation2 + $0x450] sm:$0xff]
    %v170 = vld [vmem:[#allocation2 + $0x458] sm:$0xff]
    %v171 = vld [vmem:[#allocation2 + $0x460] sm:$0xff]
    %v172 = vld [vmem:[#allocation2 + $0x468] sm:$0xff]
    %v173 = vld [vmem:[#allocation2 + $0x470] sm:$0xff]
    %v174 = vld [vmem:[#allocation2 + $0x478] sm:$0xff]
    %v175 = vld [vmem:[#allocation2 + $0x480] sm:$0xff]
    %v176 = vld [vmem:[#allocation2 + $0x488] sm:$0xff]
    %v177 = vld [vmem:[#allocation2 + $0x490] sm:$0xff]
    %v178 = vld [vmem:[#allocation2 + $0x498] sm:$0xff]
    %v179 = vld [vmem:[#allocation2 + $0x4a0] sm:$0xff]
    %v180 = vld [vmem:[#allocation2 + $0x4a8] sm:$0xff]
    %v181 = vld [vmem:[#allocation2 + $0x4b0] sm:$0xff]
    %v182 = vld [vmem:[#allocation2 + $0x4b8] sm:$0xff]
    %v183 = vld [vmem:[#allocation2 + $0x4c0] sm:$0xff]
    %v184 = vld [vmem:[#allocation2 + $0x4c8] sm:$0xff]
    %v185 = vld [vmem:[#allocation2 + $0x4d0] sm:$0xff]
    %v186 = vld [vmem:[#allocation2 + $0x4d8] sm:$0xff]
    %v187 = vld [vmem:[#allocation2 + $0x4e0] sm:$0xff]
    %v188 = vld [vmem:[#allocation2 + $0x4e8] sm:$0xff]
    %v189 = vld [vmem:[#allocation2 + $0x4f0] sm:$0xff]
    %v190 = vld [vmem:[#allocation2 + $0x4f8] sm:$0xff]
    %v191 = vld [vmem:[#allocation2 + $0x500] sm:$0xff]
    %v192 = vld [vmem:[#allocation2 + $0x508] sm:$0xff]
    %v193 = vld [vmem:[#allocation2 + $0x510] sm:$0xff]
    %v194 = vld [vmem:[#allocation2 + $0x518] sm:$0xff]
    %v195 = vld [vmem:[#allocation2 + $0x520] sm:$0xff]
    %v196 = vld [vmem:[#allocation2 + $0x528] sm:$0xff]
    %v197 = vld [vmem:[#allocation2 + $0x530] sm:$0xff]
    %v198 = vld [vmem:[#allocation2 + $0x538] sm:$0xff]
    %v199 = vld [vmem:[#allocation2 + $0x540] sm:$0xff]
    %v200 = vld [vmem:[#allocation2 + $0x548] sm:$0xff]
    %v201 = vld [vmem:[#allocation2 + $0x550] sm:$0xff]
    %v202 = vld [vmem:[#allocation2 + $0x558] sm:$0xff]
    %v203 = vld [vmem:[#allocation2 + $0x560] sm:$0xff]
    %v204 = vld [vmem:[#allocation2 + $0x568] sm:$0xff]
    %v205 = vld [vmem:[#allocation2 + $0x570] sm:$0xff]
    %v206 = vld [vmem:[#allocation2 + $0x578] sm:$0xff]
    %v207 = vld [vmem:[#allocation2 + $0x580] sm:$0xff]
    %v208 = vld [vmem:[#allocation2 + $0x588] sm:$0xff]
    %v209 = vld [vmem:[#allocation2 + $0x590] sm:$0xff]
    %v210 = vld [vmem:[#allocation2 + $0x598] sm:$0xff]
    %v211 = vld [vmem:[#allocation2 + $0x5a0] sm:$0xff]
    %v212 = vld [vmem:[#allocation2 + $0x5a8] sm:$0xff]
    %v213 = vld [vmem:[#allocation2 + $0x5b0] sm:$0xff]
    %v214 = vld [vmem:[#allocation2 + $0x5b8] sm:$0xff]
    %v215 = vld [vmem:[#allocation2 + $0x5c0] sm:$0xff]
    %v216 = vld [vmem:[#allocation2 + $0x5c8] sm:$0xff]
    %v217 = vld [vmem:[#allocation2 + $0x5d0] sm:$0xff]
    %v218 = vld [vmem:[#allocation2 + $0x5d8] sm:$0xff]
    %v219 = vld [vmem:[#allocation2 + $0x5e0] sm:$0xff]
    %v220 = vld [vmem:[#allocation2 + $0x5e8] sm:$0xff]
    %v221 = vld [vmem:[#allocation2 + $0x5f0] sm:$0xff]
    %v222 = vld [vmem:[#allocation2 + $0x5f8] sm:$0xff]
    %v223 = vld [vmem:[#allocation2 + $0x600] sm:$0xff]
    %v224 = vld [vmem:[#allocation2 + $0x608] sm:$0xff]
    %v225 = vld [vmem:[#allocation2 + $0x610] sm:$0xff]
    %v226 = vld [vmem:[#allocation2 + $0x618] sm:$0xff]
    %v227 = vld [vmem:[#allocation2 + $0x620] sm:$0xff]
    %v228 = vld [vmem:[#allocation2 + $0x628] sm:$0xff]
    %v229 = vld [vmem:[#allocation2 + $0x630] sm:$0xff]
    %v230 = vld [vmem:[#allocation2 + $0x638] sm:$0xff]
    %v231 = vld [vmem:[#allocation2 + $0x640] sm:$0xff]
    %v232 = vld [vmem:[#allocation2 + $0x648] sm:$0xff]
    %v233 = vld [vmem:[#allocation2 + $0x650] sm:$0xff]
    %v234 = vld [vmem:[#allocation2 + $0x658] sm:$0xff]
    %v235 = vld [vmem:[#allocation2 + $0x660] sm:$0xff]
    %v236 = vld [vmem:[#allocation2 + $0x668] sm:$0xff]
    %v237 = vld [vmem:[#allocation2 + $0x670] sm:$0xff]
    %v238 = vld [vmem:[#allocation2 + $0x678] sm:$0xff]
    %v239 = vld [vmem:[#allocation2 + $0x680] sm:$0xff]
    %v240 = vld [vmem:[#allocation2 + $0x688] sm:$0xff]
    %v241 = vld [vmem:[#allocation2 + $0x690] sm:$0xff]
    %v242 = vld [vmem:[#allocation2 + $0x698] sm:$0xff]
    %v243 = vld [vmem:[#allocation2 + $0x6a0] sm:$0xff]
    %v244 = vld [vmem:[#allocation2 + $0x6a8] sm:$0xff]
    %v245 = vld [vmem:[#allocation2 + $0x6b0] sm:$0xff]
    %v246 = vld [vmem:[#allocation2 + $0x6b8] sm:$0xff]
    %v247 = vld [vmem:[#allocation2 + $0x6c0] sm:$0xff]
    %v248 = vld [vmem:[#allocation2 + $0x6c8] sm:$0xff]
    %v249 = vld [vmem:[#allocation2 + $0x6d0] sm:$0xff]
    %v250 = vld [vmem:[#allocation2 + $0x6d8] sm:$0xff]
    %v251 = vld [vmem:[#allocation2 + $0x6e0] sm:$0xff]
    %v252 = vld [vmem:[#allocation2 + $0x6e8] sm:$0xff]
    %v253 = vld [vmem:[#allocation2 + $0x6f0] sm:$0xff]
    %v254 = vld [vmem:[#allocation2 + $0x6f8] sm:$0xff]
    %v255 = vld [vmem:[#allocation2 + $0x700] sm:$0xff]
    %v256 = vld [vmem:[#allocation2 + $0x708] sm:$0xff]
    %v257 = vld [vmem:[#allocation2 + $0x710] sm:$0xff]
    %v258 = vld [vmem:[#allocation2 + $0x718] sm:$0xff]
    %v259 = vld [vmem:[#allocation2 + $0x720] sm:$0xff]
    %v260 = vld [vmem:[#allocation2 + $0x728] sm:$0xff]
    %v261 = vld [vmem:[#allocation2 + $0x730] sm:$0xff]
    %v262 = vld [vmem:[#allocation2 + $0x738] sm:$0xff]
    %v263 = vld [vmem:[#allocation2 + $0x740] sm:$0xff]
    %v264 = vld [vmem:[#allocation2 + $0x748] sm:$0xff]
    %v265 = vld [vmem:[#allocation2 + $0x750] sm:$0xff]
    %v266 = vld [vmem:[#allocation2 + $0x758] sm:$0xff]
    %v267 = vld [vmem:[#allocation2 + $0x760] sm:$0xff]
    %v268 = vld [vmem:[#allocation2 + $0x768] sm:$0xff]
    %v269 = vld [vmem:[#allocation2 + $0x770] sm:$0xff]
    %v270 = vld [vmem:[#allocation2 + $0x778] sm:$0xff]
    %v271 = vld [vmem:[#allocation2 + $0x780] sm:$0xff]
    %v272 = vld [vmem:[#allocation2 + $0x788] sm:$0xff]
    %v273 = vld [vmem:[#allocation2 + $0x790] sm:$0xff]
    %v274 = vld [vmem:[#allocation2 + $0x798] sm:$0xff]
    %v275 = vld [vmem:[#allocation2 + $0x7a0] sm:$0xff]
    %v276 = vld [vmem:[#allocation2 + $0x7a8] sm:$0xff]
    %v277 = vld [vmem:[#allocation2 + $0x7b0] sm:$0xff]
    %v278 = vld [vmem:[#allocation2 + $0x7b8] sm:$0xff]
    %v279 = vld [vmem:[#allocation2 + $0x7c0] sm:$0xff]
    %v280 = vld [vmem:[#allocation2 + $0x7c8] sm:$0xff]
    %v281 = vld [vmem:[#allocation2 + $0x7d0] sm:$0xff]
    %v282 = vld [vmem:[#allocation2 + $0x7d8] sm:$0xff]
    %v283 = vld [vmem:[#allocation2 + $0x7e0] sm:$0xff]
    %v284 = vld [vmem:[#allocation2 + $0x7e8] sm:$0xff]
    %v285 = vld [vmem:[#allocation2 + $0x7f0] sm:$0xff]
    %v286 = vld [vmem:[#allocation2 + $0x7f8] sm:$0xff]
    %v287 = vld [vmem:[#allocation2 + $0x800] sm:$0xff]
    %v288 = vld [vmem:[#allocation2 + $0x808] sm:$0xff]
    %v289 = vld [vmem:[#allocation2 + $0x810] sm:$0xff]
    %v290 = vld [vmem:[#allocation2 + $0x818] sm:$0xff]
    %v291 = vld [vmem:[#allocation2 + $0x820] sm:$0xff]
    %v292 = vld [vmem:[#allocation2 + $0x828] sm:$0xff]
    %v293 = vld [vmem:[#allocation2 + $0x830] sm:$0xff]
    %v294 = vld [vmem:[#allocation2 + $0x838] sm:$0xff]
    %v295 = vld [vmem:[#allocation2 + $0x840] sm:$0xff]
    %v296 = vld [vmem:[#allocation2 + $0x848] sm:$0xff]
    %v297 = vld [vmem:[#allocation2 + $0x850] sm:$0xff]
    %v298 = vld [vmem:[#allocation2 + $0x858] sm:$0xff]
    %v299 = vld [vmem:[#allocation2 + $0x860] sm:$0xff]
    %v300 = vld [vmem:[#allocation2 + $0x868] sm:$0xff]
    %v301 = vld [vmem:[#allocation2 + $0x870] sm:$0xff]
    %v302 = vld [vmem:[#allocation2 + $0x878] sm:$0xff]
    %v303 = vld [vmem:[#allocation2 + $0x880] sm:$0xff]
    %v304 = vld [vmem:[#allocation2 + $0x888] sm:$0xff]
    %v305 = vld [vmem:[#allocation2 + $0x890] sm:$0xff]
    %v306 = vld [vmem:[#allocation2 + $0x898] sm:$0xff]
    %v307 = vld [vmem:[#allocation2 + $0x8a0] sm:$0xff]
    %v308 = vld [vmem:[#allocation2 + $0x8a8] sm:$0xff]
    %v309 = vld [vmem:[#allocation2 + $0x8b0] sm:$0xff]
    %v310 = vld [vmem:[#allocation2 + $0x8b8] sm:$0xff]
    %v311 = vld [vmem:[#allocation2 + $0x8c0] sm:$0xff]
    %v312 = vld [vmem:[#allocation2 + $0x8c8] sm:$0xff]
    %v313 = vld [vmem:[#allocation2 + $0x8d0] sm:$0xff]
    %v314 = vld [vmem:[#allocation2 + $0x8d8] sm:$0xff]
    %v315 = vld [vmem:[#allocation2 + $0x8e0] sm:$0xff]
    %v316 = vld [vmem:[#allocation2 + $0x8e8] sm:$0xff]
    %v317 = vld [vmem:[#allocation2 + $0x8f0] sm:$0xff]
    %v318 = vld [vmem:[#allocation2 + $0x8f8] sm:$0xff]
    %v319 = vld [vmem:[#allocation2 + $0x900] sm:$0xff]
    %v320 = vld [vmem:[#allocation2 + $0x908] sm:$0xff]
    %v321 = vld [vmem:[#allocation2 + $0x910] sm:$0xff]
    %v322 = vld [vmem:[#allocation2 + $0x918] sm:$0xff]
    %v323 = vld [vmem:[#allocation2 + $0x920] sm:$0xff]
    %v324 = vld [vmem:[#allocation2 + $0x928] sm:$0xff]
    %v325 = vld [vmem:[#allocation2 + $0x930] sm:$0xff]
    %v326 = vld [vmem:[#allocation2 + $0x938] sm:$0xff]
    %v327 = vld [vmem:[#allocation2 + $0x940] sm:$0xff]
    %v328 = vld [vmem:[#allocation2 + $0x948] sm:$0xff]
    %v329 = vld [vmem:[#allocation2 + $0x950] sm:$0xff]
    %v330 = vld [vmem:[#allocation2 + $0x958] sm:$0xff]
    %v331 = vld [vmem:[#allocation2 + $0x960] sm:$0xff]
    %v332 = vld [vmem:[#allocation2 + $0x968] sm:$0xff]
    %v333 = vld [vmem:[#allocation2 + $0x970] sm:$0xff]
    %v334 = vld [vmem:[#allocation2 + $0x978] sm:$0xff]
    %v335 = vld [vmem:[#allocation2 + $0x980] sm:$0xff]
    %v336 = vld [vmem:[#allocation2 + $0x988] sm:$0xff]
    %v337 = vld [vmem:[#allocation2 + $0x990] sm:$0xff]
    %v338 = vld [vmem:[#allocation2 + $0x998] sm:$0xff]
    %v339 = vld [vmem:[#allocation2 + $0x9a0] sm:$0xff]
    %v340 = vld [vmem:[#allocation2 + $0x9a8] sm:$0xff]
    %v341 = vld [vmem:[#allocation2 + $0x9b0] sm:$0xff]
    %v342 = vld [vmem:[#allocation2 + $0x9b8] sm:$0xff]
    %v343 = vld [vmem:[#allocation2 + $0x9c0] sm:$0xff]
    %v344 = vld [vmem:[#allocation2 + $0x9c8] sm:$0xff]
    %v345 = vld [vmem:[#allocation2 + $0x9d0] sm:$0xff]
    %v346 = vld [vmem:[#allocation2 + $0x9d8] sm:$0xff]
    %v347 = vld [vmem:[#allocation2 + $0x9e0] sm:$0xff]
    %v348 = vld [vmem:[#allocation2 + $0x9e8] sm:$0xff]
    %v349 = vld [vmem:[#allocation2 + $0x9f0] sm:$0xff]
    %v350 = vld [vmem:[%s0] sm:$0xff]
    %v351 = vld [vmem:[%s0 + $0x8] sm:$0xff]
    %v352 = vld [vmem:[%s0 + $0x10] sm:$0xff]
    %v353 = vld [vmem:[%s0 + $0x18] sm:$0xff]
    %v354 = vld [vmem:[%s0 + $0x20] sm:$0xff]
    %v355 = vld [vmem:[%s0 + $0x28] sm:$0xff]
    %v356 = vld [vmem:[%s0 + $0x30] sm:$0xff]
    %v357 = vld [vmem:[%s0 + $0x38] sm:$0xff]
    %v358 = vld [vmem:[%s0 + $0x40] sm:$0xff]
    %v359 = vld [vmem:[%s0 + $0x48] sm:$0xff]
    %v360 = vld [vmem:[%s0 + $0x50] sm:$0xff]
    %v361 = vld [vmem:[%s0 + $0x58] sm:$0xff]
    %v362 = vld [vmem:[%s0 + $0x60] sm:$0xff]
    %v363 = vld [vmem:[%s0 + $0x68] sm:$0xff]
    %v364 = vld [vmem:[%s0 + $0x70] sm:$0xff]
    %v365 = vld [vmem:[%s0 + $0x78] sm:$0xff]
    %v366 = vld [vmem:[%s0 + $0x80] sm:$0xff]
    %v367 = vld [vmem:[%s0 + $0x88] sm:$0xff]
    %v368 = vld [vmem:[%s0 + $0x90] sm:$0xff]
    %v369 = vld [vmem:[%s0 + $0x98] sm:$0xff]
    %v370 = vld [vmem:[%s0 + $0xa0] sm:$0xff]
    %v371 = vld [vmem:[%s0 + $0xa8] sm:$0xff]
    %v372 = vld [vmem:[%s0 + $0xb0] sm:$0xff]
    %v373 = vld [vmem:[%s0 + $0xb8] sm:$0xff]
    %v374 = vld [vmem:[%s0 + $0xc0] sm:$0xff]
    %v375 = vld [vmem:[%s0 + $0xc8] sm:$0xff]
    %v376 = vld [vmem:[%s0 + $0xd0] sm:$0xff]
    %v377 = vld [vmem:[%s0 + $0xd8] sm:$0xff]
    %v378 = vld [vmem:[%s0 + $0xe0] sm:$0xff]
    %v379 = vld [vmem:[%s0 + $0xe8] sm:$0xff]
    %v380 = vld [vmem:[%s0 + $0xf0] sm:$0xff]
    %v381 = vld [vmem:[%s0 + $0xf8] sm:$0xff]
    %v382 = vld [vmem:[%s0 + $0x100] sm:$0xff]
    %v383 = vld [vmem:[%s0 + $0x108] sm:$0xff]
    %v384 = vld [vmem:[%s0 + $0x110] sm:$0xff]
    %v385 = vld [vmem:[%s0 + $0x118] sm:$0xff]
    %v386 = vld [vmem:[%s0 + $0x120] sm:$0xff]
    %v387 = vld [vmem:[%s0 + $0x128] sm:$0xff]
    %v388 = vld [vmem:[%s0 + $0x130] sm:$0xff]
    %v389 = vld [vmem:[%s0 + $0x138] sm:$0xff]
    %v390 = vld [vmem:[%s0 + $0x140] sm:$0xff]
    %v391 = vld [vmem:[%s0 + $0x148] sm:$0xff]
    %v392 = vld [vmem:[%s0 + $0x150] sm:$0xff]
    %v393 = vld [vmem:[%s0 + $0x158] sm:$0xff]
    %v394 = vld [vmem:[%s0 + $0x160] sm:$0xff]
    %v395 = vld [vmem:[%s0 + $0x168] sm:$0xff]
    %v396 = vld [vmem:[%s0 + $0x170] sm:$0xff]
    %v397 = vld [vmem:[%s0 + $0x178] sm:$0xff]
    %v398 = vld [vmem:[%s0 + $0x180] sm:$0xff]
    %v399 = vld [vmem:[%s0 + $0x188] sm:$0xff]
    %v400 = vld [vmem:[%s0 + $0x190] sm:$0xff]
    %v401 = vld [vmem:[%s0 + $0x198] sm:$0xff]
    %v402 = vld [vmem:[%s0 + $0x1a0] sm:$0xff]
    %v403 = vld [vmem:[%s0 + $0x1a8] sm:$0xff]
    %v404 = vld [vmem:[%s0 + $0x1b0] sm:$0xff]
    %v405 = vld [vmem:[%s0 + $0x1b8] sm:$0xff]
    %v406 = vld [vmem:[%s0 + $0x1c0] sm:$0xff]
    %v407 = vld [vmem:[%s0 + $0x1c8] sm:$0xff]
    %v408 = vld [vmem:[%s0 + $0x1d0] sm:$0xff]
    %v409 = vld [vmem:[%s0 + $0x1d8] sm:$0xff]
    %v410 = vld [vmem:[%s0 + $0x1e0] sm:$0xff]
    %v411 = vld [vmem:[%s0 + $0x1e8] sm:$0xff]
    %v412 = vld [vmem:[%s0 + $0x1f0] sm:$0xff]
    %v413 = vld [vmem:[%s0 + $0x1f8] sm:$0xff]
    %v414 = vld [vmem:[%s0 + $0x200] sm:$0xff]
    %v415 = vld [vmem:[%s0 + $0x208] sm:$0xff]
    %v416 = vld [vmem:[%s0 + $0x210] sm:$0xff]
    %v417 = vld [vmem:[%s0 + $0x218] sm:$0xff]
    %v418 = vld [vmem:[%s0 + $0x220] sm:$0xff]
    %v419 = vld [vmem:[%s0 + $0x228] sm:$0xff]
    %v420 = vld [vmem:[%s0 + $0x230] sm:$0xff]
    %v421 = vld [vmem:[%s0 + $0x238] sm:$0xff]
    %v422 = vld [vmem:[%s0 + $0x240] sm:$0xff]
    %v423 = vld [vmem:[%s0 + $0x248] sm:$0xff]
    %v424 = vld [vmem:[%s0 + $0x250] sm:$0xff]
    %v425 = vld [vmem:[%s0 + $0x258] sm:$0xff]
    %v426 = vld [vmem:[%s0 + $0x260] sm:$0xff]
    %v427 = vld [vmem:[%s0 + $0x268] sm:$0xff]
    %v428 = vld [vmem:[%s0 + $0x270] sm:$0xff]
    %v429 = vld [vmem:[%s0 + $0x278] sm:$0xff]
    %v430 = vld [vmem:[%s0 + $0x280] sm:$0xff]
    %v431 = vld [vmem:[%s0 + $0x288] sm:$0xff]
    %v432 = vld [vmem:[%s0 + $0x290] sm:$0xff]
    %v433 = vld [vmem:[%s0 + $0x298] sm:$0xff]
    %v434 = vld [vmem:[%s0 + $0x2a0] sm:$0xff]
    %v435 = vld [vmem:[%s0 + $0x2a8] sm:$0xff]
    %v436 = vld [vmem:[%s0 + $0x2b0] sm:$0xff]
    %v437 = vld [vmem:[%s0 + $0x2b8] sm:$0xff]
    %v438 = vld [vmem:[%s0 + $0x2c0] sm:$0xff]
    %v439 = vld [vmem:[%s0 + $0x2c8] sm:$0xff]
    %v440 = vld [vmem:[%s0 + $0x2d0] sm:$0xff]
    %v441 = vld [vmem:[%s0 + $0x2d8] sm:$0xff]
    %v442 = vld [vmem:[%s0 + $0x2e0] sm:$0xff]
    %v443 = vld [vmem:[%s0 + $0x2e8] sm:$0xff]
    %v444 = vld [vmem:[%s0 + $0x2f0] sm:$0xff]
    %v445 = vld [vmem:[%s0 + $0x2f8] sm:$0xff]
    %v446 = vld [vmem:[%s0 + $0x300] sm:$0xff]
    %v447 = vld [vmem:[%s0 + $0x308] sm:$0xff]
    %v448 = vld [vmem:[%s0 + $0x310] sm:$0xff]
    %v449 = vld [vmem:[%s0 + $0x318] sm:$0xff]
    %v450 = vld [vmem:[%s0 + $0x320] sm:$0xff]
    %v451 = vld [vmem:[%s0 + $0x328] sm:$0xff]
    %v452 = vld [vmem:[%s0 + $0x330] sm:$0xff]
    %v453 = vld [vmem:[%s0 + $0x338] sm:$0xff]
    %v454 = vld [vmem:[%s0 + $0x340] sm:$0xff]
    %v455 = vld [vmem:[%s0 + $0x348] sm:$0xff]
    %v456 = vld [vmem:[%s0 + $0x350] sm:$0xff]
    %v457 = vld [vmem:[%s0 + $0x358] sm:$0xff]
    %v458 = vld [vmem:[%s0 + $0x360] sm:$0xff]
    %v459 = vld [vmem:[%s0 + $0x368] sm:$0xff]
    %v460 = vld [vmem:[%s0 + $0x370] sm:$0xff]
    %v461 = vld [vmem:[%s0 + $0x378] sm:$0xff]
    %v462 = vld [vmem:[%s0 + $0x380] sm:$0xff]
    %v463 = vld [vmem:[%s0 + $0x388] sm:$0xff]
    %v464 = vld [vmem:[%s0 + $0x390] sm:$0xff]
    %v465 = vld [vmem:[%s0 + $0x398] sm:$0xff]
    %v466 = vld [vmem:[%s0 + $0x3a0] sm:$0xff]
    %v467 = vld [vmem:[%s0 + $0x3a8] sm:$0xff]
    %v468 = vld [vmem:[%s0 + $0x3b0] sm:$0xff]
    %v469 = vld [vmem:[%s0 + $0x3b8] sm:$0xff]
    %v470 = vld [vmem:[%s0 + $0x3c0] sm:$0xff]
    %v471 = vld [vmem:[%s0 + $0x3c8] sm:$0xff]
    %v472 = vld [vmem:[%s0 + $0x3d0] sm:$0xff]
    %v473 = vld [vmem:[%s0 + $0x3d8] sm:$0xff]
    %v474 = vld [vmem:[%s0 + $0x3e0] sm:$0xff]
    %v475 = vld [vmem:[%s0 + $0x3e8] sm:$0xff]
    %v476 = vld [vmem:[%s0 + $0x3f0] sm:$0xff]
    %v477 = vld [vmem:[%s0 + $0x3f8] sm:$0xff]
    %v478 = vld [vmem:[%s0 + $0x400] sm:$0xff]
    %v479 = vld [vmem:[%s0 + $0x408] sm:$0xff]
    %v480 = vld [vmem:[%s0 + $0x410] sm:$0xff]
    %v481 = vld [vmem:[%s0 + $0x418] sm:$0xff]
    %v482 = vld [vmem:[%s0 + $0x420] sm:$0xff]
    %v483 = vld [vmem:[%s0 + $0x428] sm:$0xff]
    %v484 = vld [vmem:[%s0 + $0x430] sm:$0xff]
    %v485 = vld [vmem:[%s0 + $0x438] sm:$0xff]
    %v486 = vld [vmem:[%s0 + $0x440] sm:$0xff]
    %v487 = vld [vmem:[%s0 + $0x448] sm:$0xff]
    %v488 = vld [vmem:[%s0 + $0x450] sm:$0xff]
    %v489 = vld [vmem:[%s0 + $0x458] sm:$0xff]
    %v490 = vld [vmem:[%s0 + $0x460] sm:$0xff]
    %v491 = vld [vmem:[%s0 + $0x468] sm:$0xff]
    %v492 = vld [vmem:[%s0 + $0x470] sm:$0xff]
    %v493 = vld [vmem:[%s0 + $0x478] sm:$0xff]
    %v494 = vld [vmem:[%s0 + $0x480] sm:$0xff]
    %v495 = vld [vmem:[%s0 + $0x488] sm:$0xff]
    %v496 = vld [vmem:[%s0 + $0x490] sm:$0xff]
    %v497 = vld [vmem:[%s0 + $0x498] sm:$0xff]
    %v498 = vld [vmem:[%s0 + $0x4a0] sm:$0xff]
    %v499 = vld [vmem:[%s0 + $0x4a8] sm:$0xff]
    %v500 = vld [vmem:[%s0 + $0x4b0] sm:$0xff]
    %v501 = vld [vmem:[%s0 + $0x4b8] sm:$0xff]
    %v502 = vld [vmem:[%s0 + $0x4c0] sm:$0xff]
    %v503 = vld [vmem:[%s0 + $0x4c8] sm:$0xff]
    %v504 = vld [vmem:[%s0 + $0x4d0] sm:$0xff]
    %v505 = vld [vmem:[%s0 + $0x4d8] sm:$0xff]
    %v506 = vld [vmem:[%s0 + $0x4e0] sm:$0xff]
    %v507 = vld [vmem:[%s0 + $0x4e8] sm:$0xff]
    %v508 = vld [vmem:[%s0 + $0x4f0] sm:$0xff]
    %v509 = vld [vmem:[%s0 + $0x4f8] sm:$0xff]
    %v510 = vld [vmem:[%s0 + $0x500] sm:$0xff]
    %v511 = vld [vmem:[%s0 + $0x508] sm:$0xff]
    %v512 = vld [vmem:[%s0 + $0x510] sm:$0xff]
    %v513 = vld [vmem:[%s0 + $0x518] sm:$0xff]
    %v514 = vld [vmem:[%s0 + $0x520] sm:$0xff]
    %v515 = vld [vmem:[%s0 + $0x528] sm:$0xff]
    %v516 = vld [vmem:[%s0 + $0x530] sm:$0xff]
    %v517 = vld [vmem:[%s0 + $0x538] sm:$0xff]
    %v518 = vld [vmem:[%s0 + $0x540] sm:$0xff]
    %v519 = vld [vmem:[%s0 + $0x548] sm:$0xff]
    %v520 = vld [vmem:[%s0 + $0x550] sm:$0xff]
    %v521 = vld [vmem:[%s0 + $0x558] sm:$0xff]
    %v522 = vld [vmem:[%s0 + $0x560] sm:$0xff]
    %v523 = vld [vmem:[%s0 + $0x568] sm:$0xff]
    %vm524 = vcmask 916480
    %v526 = vsel %vm524, %v41, 0
    %v529 = vsel %vm524, %v52, 0
    %v532 = vsel %vm524, %v63, 0
    %v535 = vsel %vm524, %v74, 0
    %v538 = vsel %vm524, %v85, 0
    %v541 = vsel %vm524, %v96, 0
    %v544 = vsel %vm524, %v107, 0
    %v547 = vsel %vm524, %v118, 0
    %v550 = vsel %vm524, %v129, 0
    %v553 = vsel %vm524, %v140, 0
    %v556 = vsel %vm524, %v151, 0
    %v559 = vsel %vm524, %v162, 0
    %v562 = vsel %vm524, %v173, 0
    %v565 = vsel %vm524, %v184, 0
    %v568 = vsel %vm524, %v195, 0
    %v571 = vsel %vm524, %v206, 0
    %v574 = vsel %vm524, %v217, 0
    %v577 = vsel %vm524, %v228, 0
    %v580 = vsel %vm524, %v239, 0
    %v583 = vsel %vm524, %v250, 0
    %v586 = vsel %vm524, %v261, 0
    %v589 = vsel %vm524, %v272, 0
    %v592 = vsel %vm524, %v283, 0
    %v595 = vsel %vm524, %v294, 0
    %v598 = vsel %vm524, %v305, 0
    %v601 = vsel %vm524, %v316, 0
    %v604 = vsel %vm524, %v327, 0
    %v607 = vsel %vm524, %v338, 0
    %v610 = vsel %vm524, %v349, 0
    %612 = vmatprep.subr.mxu0 0.0
    %613 = vmatpush1.msra.mxu0 %v350
    %614 = vmatprep.subr.mxu0 0.0
    %615 = vmatpush1.msra.mxu0 %v351
    %616 = vmatprep.subr.mxu0 0.0
    %617 = vmatpush1.msra.mxu0 %v352
    %618 = vmatprep.subr.mxu0 0.0
    %619 = vmatpush1.msra.mxu0 %v353
    %620 = vmatprep.subr.mxu0 0.0
    %621 = vmatpush1.msra.mxu0 %v354
    %622 = vmatprep.subr.mxu0 0.0
    %623 = vmatpush1.msra.mxu0 %v355
    %624 = vmatprep.subr.mxu0 0.0
    %625 = vmatpush1.msra.mxu0 %v356
    %626 = vmatprep.subr.mxu0 0.0
    %627 = vmatpush1.msra.mxu0 %v357
    %628 = vmatprep.subr.mxu0 0.0
    %629 = vmatpush1.msra.mxu0 %v358
    %630 = vmatprep.subr.mxu0 0.0
    %631 = vmatpush1.msra.mxu0 %v359
    %632 = vmatprep.subr.mxu0 0.0
    %633 = vmatpush1.msra.mxu0 %v360
    %634 = vmatprep.subr.mxu0 0.0
    %635 = vmatpush1.msra.mxu0 %v361
    %636 = vmatprep.subr.mxu0 0.0
    %637 = vmatpush1.msra.mxu0 %v362
    %638 = vmatprep.subr.mxu0 0.0
    %639 = vmatpush1.msra.mxu0 %v363
    %640 = vmatprep.subr.mxu0 0.0
    %641 = vmatpush1.msra.mxu0 %v364
    %642 = vmatprep.subr.mxu0 0.0
    %643 = vmatpush1.msra.mxu0 %v365
    %644 = vmatprep.subr.mxu0 0.0
    %645 = vmatpush1.msra.mxu0 %v366
    %646 = vmatprep.subr.mxu0 0.0
    %647 = vmatpush1.msra.mxu0 %v367
    %648 = vmatprep.subr.mxu0 0.0
    %649 = vmatpush1.msra.mxu0 %v368
    %650 = vmatprep.subr.mxu0 0.0
    %651 = vmatpush1.msra.mxu0 %v369
    %652 = vmatprep.subr.mxu0 0.0
    %653 = vmatpush1.msra.mxu0 %v370
    %654 = vmatprep.subr.mxu0 0.0
    %655 = vmatpush1.msra.mxu0 %v371
    %656 = vmatprep.subr.mxu0 0.0
    %657 = vmatpush1.msra.mxu0 %v372
    %658 = vmatprep.subr.mxu0 0.0
    %659 = vmatpush1.msra.mxu0 %v373
    %660 = vmatprep.subr.mxu0 0.0
    %661 = vmatpush1.msra.mxu0 %v374
    %662 = vmatprep.subr.mxu0 0.0
    %663 = vmatpush1.msra.mxu0 %v375
    %664 = vmatprep.subr.mxu0 0.0
    %665 = vmatpush1.msra.mxu0 %v376
    %666 = vmatprep.subr.mxu0 0.0
    %667 = vmatpush1.msra.mxu0 %v377
    %668 = vmatprep.subr.mxu0 0.0
    %669 = vmatpush1.msra.mxu0 %v378
    %670 = vmatprep.subr.mxu0 0.0
    %671 = vmatpush1.msra.mxu0 %v379
    %672 = vmatprep.subr.mxu0 0.0
    %673 = vmatpush1.msra.mxu0 %v380
    %674 = vmatprep.subr.mxu0 0.0
    %675 = vmatpush1.msra.mxu0 %v381
    %676 = vmatprep.mubr.f32.mxu0 %v32
    %677 = vmatmul.mubr.f32.gmra.mrb[0].mxu0 %v31
    %v678 = vpop.f32.mrb[0].mxu0
    %v679 = vadd.f32 0.0, %v678
    %v680 = vpop.f32.mrb[0].mxu0
    %681 = vmatprep.mubr.f32.mxu0 %v43
    %682 = vmatmul.mubr.f32.gmra.mrb[0].mxu0 %v42
    %v683 = vpop.f32.mrb[0].mxu0
    %v684 = vadd.f32 0.0, %v683
    %v685 = vpop.f32.mrb[0].mxu0
    %686 = vmatprep.mubr.f32.mxu0 %v54
    %687 = vmatmul.mubr.f32.gmra.mrb[0].mxu0 %v53
    %v688 = vpop.f32.mrb[0].mxu0
    %v689 = vadd.f32 0.0, %v688
    %v690 = vpop.f32.mrb[0].mxu0
    %691 = vmatprep.mubr.f32.mxu0 %v65
    %692 = vmatmul.mubr.f32.gmra.mrb[0].mxu0 %v64
    %v693 = vpop.f32.mrb[0].mxu0
    %v694 = vadd.f32 0.0, %v693
    %v695 = vpop.f32.mrb[0].mxu0
    %696 = vmatprep.mubr.f32.mxu0 %v76
    %697 = vmatmul.mubr.f32.gmra.mrb[0].mxu0 %v75
    %v698 = vpop.f32.mrb[0].mxu0
    %v699 = vadd.f32 0.0, %v698
    %v700 = vpop.f32.mrb[0].mxu0
    %701 = vmatprep.mubr.f32.mxu0 %v87
    %702 = vmatmul.mubr.f32.gmra.mrb[0].mxu0 %v86
    %v703 = vpop.f32.mrb[0].mxu0
    %v704 = vadd.f32 0.0, %v703
    %v705 = vpop.f32.mrb[0].mxu0
    %706 = vmatprep.mubr.f32.mxu0 %v98
    %707 = vmatmul.mubr.f32.gmra.mrb[0].mxu0 %v97
    %v708 = vpop.f32.mrb[0].mxu0
    %v709 = vadd.f32 0.0, %v708
    %v710 = vpop.f32.mrb[0].mxu0
    %711 = vmatprep.mubr.f32.mxu0 %v109
    %712 = vmatmul.mubr.f32.gmra.mrb[0].mxu0 %v108
    %v713 = vpop.f32.mrb[0].mxu0
    %v714 = vadd.f32 0.0, %v713
    %v715 = vpop.f32.mrb[0].mxu0
    %716 = vmatprep.mubr.f32.mxu0 %v120
    %717 = vmatmul.mubr.f32.gmra.mrb[0].mxu0 %v119
    %v718 = vpop.f32.mrb[0].mxu0
    %v719 = vadd.f32 0.0, %v718
    %v720 = vpop.f32.mrb[0].mxu0
    %721 = vmatprep.mubr.f32.mxu0 %v131
    %722 = vmatmul.mubr.f32.gmra.mrb[0].mxu0 %v130
    %v723 = vpop.f32.mrb[0].mxu0
    %v724 = vadd.f32 0.0, %v723
    %v725 = vpop.f32.mrb[0].mxu0
    %726 = vmatprep.mubr.f32.mxu0 %v142
    %727 = vmatmul.mubr.f32.gmra.mrb[0].mxu0 %v141
    %v728 = vpop.f32.mrb[0].mxu0
    %v729 = vadd.f32 0.0, %v728
    %v730 = vpop.f32.mrb[0].mxu0
    %731 = vmatprep.mubr.f32.mxu0 %v153
    %732 = vmatmul.mubr.f32.gmra.mrb[0].mxu0 %v152
    %v733 = vpop.f32.mrb[0].mxu0
    %v734 = vadd.f32 0.0, %v733
    %v735 = vpop.f32.mrb[0].mxu0
    %736 = vmatprep.mubr.f32.mxu0 %v164
    %737 = vmatmul.mubr.f32.gmra.mrb[0].mxu0 %v163
    %v738 = vpop.f32.mrb[0].mxu0
    %v739 = vadd.f32 0.0, %v738
    %v740 = vpop.f32.mrb[0].mxu0
    %741 = vmatprep.mubr.f32.mxu0 %v175
    %742 = vmatmul.mubr.f32.gmra.mrb[0].mxu0 %v174
    %v743 = vpop.f32.mrb[0].mxu0
    %v744 = vadd.f32 0.0, %v743
    %v745 = vpop.f32.mrb[0].mxu0
    %746 = vmatprep.mubr.f32.mxu0 %v186
    %747 = vmatmul.mubr.f32.gmra.mrb[0].mxu0 %v185
    %v748 = vpop.f32.mrb[0].mxu0
    %v749 = vadd.f32 0.0, %v748
    %v750 = vpop.f32.mrb[0].mxu0
    %751 = vmatprep.mubr.f32.mxu0 %v197
    %752 = vmatmul.mubr.f32.gmra.mrb[0].mxu0 %v196
    %v753 = vpop.f32.mrb[0].mxu0
    %v754 = vadd.f32 0.0, %v753
    %v755 = vpop.f32.mrb[0].mxu0
    %756 = vmatprep.mubr.f32.mxu0 %v208
    %757 = vmatmul.mubr.f32.gmra.mrb[0].mxu0 %v207
    %v758 = vpop.f32.mrb[0].mxu0
    %v759 = vadd.f32 0.0, %v758
    %v760 = vpop.f32.mrb[0].mxu0
    %761 = vmatprep.mubr.f32.mxu0 %v219
    %762 = vmatmul.mubr.f32.gmra.mrb[0].mxu0 %v218
    %v763 = vpop.f32.mrb[0].mxu0
    %v764 = vadd.f32 0.0, %v763
    %v765 = vpop.f32.mrb[0].mxu0
    %766 = vmatprep.mubr.f32.mxu0 %v230
    %767 = vmatmul.mubr.f32.gmra.mrb[0].mxu0 %v229
    %v768 = vpop.f32.mrb[0].mxu0
    %v769 = vadd.f32 0.0, %v768
    %v770 = vpop.f32.mrb[0].mxu0
    %771 = vmatprep.mubr.f32.mxu0 %v241
    %772 = vmatmul.mubr.f32.gmra.mrb[0].mxu0 %v240
    %v773 = vpop.f32.mrb[0].mxu0
    %v774 = vadd.f32 0.0, %v773
    %v775 = vpop.f32.mrb[0].mxu0
    %776 = vmatprep.mubr.f32.mxu0 %v252
    %777 = vmatmul.mubr.f32.gmra.mrb[0].mxu0 %v251
    %v778 = vpop.f32.mrb[0].mxu0
    %v779 = vadd.f32 0.0, %v778
    %v780 = vpop.f32.mrb[0].mxu0
    %781 = vmatprep.mubr.f32.mxu0 %v263
    %782 = vmatmul.mubr.f32.gmra.mrb[0].mxu0 %v262
    %v783 = vpop.f32.mrb[0].mxu0
    %v784 = vadd.f32 0.0, %v783
    %v785 = vpop.f32.mrb[0].mxu0
    %786 = vmatprep.mubr.f32.mxu0 %v274
    %787 = vmatmul.mubr.f32.gmra.mrb[0].mxu0 %v273
    %v788 = vpop.f32.mrb[0].mxu0
    %v789 = vadd.f32 0.0, %v788
    %v790 = vpop.f32.mrb[0].mxu0
    %791 = vmatprep.mubr.f32.mxu0 %v285
    %792 = vmatmul.mubr.f32.gmra.mrb[0].mxu0 %v284
    %v793 = vpop.f32.mrb[0].mxu0
    %v794 = vadd.f32 0.0, %v793
    %v795 = vpop.f32.mrb[0].mxu0
    %796 = vmatprep.mubr.f32.mxu0 %v296
    %797 = vmatmul.mubr.f32.gmra.mrb[0].mxu0 %v295
    %v798 = vpop.f32.mrb[0].mxu0
    %v799 = vadd.f32 0.0, %v798
    %v800 = vpop.f32.mrb[0].mxu0
    %801 = vmatprep.mubr.f32.mxu0 %v307
    %802 = vmatmul.mubr.f32.gmra.mrb[0].mxu0 %v306
    %v803 = vpop.f32.mrb[0].mxu0
    %v804 = vadd.f32 0.0, %v803
    %v805 = vpop.f32.mrb[0].mxu0
    %806 = vmatprep.mubr.f32.mxu0 %v318
    %807 = vmatmul.mubr.f32.gmra.mrb[0].mxu0 %v317
    %v808 = vpop.f32.mrb[0].mxu0
    %v809 = vadd.f32 0.0, %v808
    %v810 = vpop.f32.mrb[0].mxu0
    %811 = vmatprep.mubr.f32.mxu0 %v329
    %812 = vmatmul.mubr.f32.gmra.mrb[0].mxu0 %v328
    %v813 = vpop.f32.mrb[0].mxu0
    %v814 = vadd.f32 0.0, %v813
    %v815 = vpop.f32.mrb[0].mxu0
    %816 = vmatprep.mubr.f32.mxu0 %v340
    %817 = vmatmul.mubr.f32.gmra.mrb[0].mxu0 %v339
    %v818 = vpop.f32.mrb[0].mxu0
    %v819 = vadd.f32 0.0, %v818
    %v820 = vpop.f32.mrb[0].mxu0
    %821 = vdwg.mxu0
    %822 = vmatprep.subr.mxu0 0.0
    %823 = vmatpush1.msra.mxu0 %v382
    %824 = vmatprep.subr.mxu0 0.0
    %825 = vmatpush1.msra.mxu0 %v383
    %826 = vmatprep.subr.mxu0 0.0
    %827 = vmatpush1.msra.mxu0 %v384
    %828 = vmatprep.subr.mxu0 0.0
    %829 = vmatpush1.msra.mxu0 %v385
    %830 = vmatprep.subr.mxu0 0.0
    %831 = vmatpush1.msra.mxu0 %v386
    %832 = vmatprep.subr.mxu0 0.0
    %833 = vmatpush1.msra.mxu0 %v387
    %834 = vmatprep.subr.mxu0 0.0
    %835 = vmatpush1.msra.mxu0 %v388
    %836 = vmatprep.subr.mxu0 0.0
    %837 = vmatpush1.msra.mxu0 %v389
    %838 = vmatprep.subr.mxu0 0.0
    %839 = vmatpush1.msra.mxu0 %v390
    %840 = vmatprep.subr.mxu0 0.0
    %841 = vmatpush1.msra.mxu0 %v391
    %842 = vmatprep.subr.mxu0 0.0
    %843 = vmatpush1.msra.mxu0 %v392
    %844 = vmatprep.subr.mxu0 0.0
    %845 = vmatpush1.msra.mxu0 %v393
    %846 = vmatprep.subr.mxu0 0.0
    %847 = vmatpush1.msra.mxu0 %v394
    %848 = vmatprep.subr.mxu0 0.0
    %849 = vmatpush1.msra.mxu0 %v395
    %850 = vmatprep.subr.mxu0 0.0
    %851 = vmatpush1.msra.mxu0 %v396
    %852 = vmatprep.subr.mxu0 0.0
    %853 = vmatpush1.msra.mxu0 %v397
    %854 = vmatprep.subr.mxu0 0.0
    %855 = vmatpush1.msra.mxu0 %v398
    %856 = vmatprep.subr.mxu0 0.0
    %857 = vmatpush1.msra.mxu0 %v399
    %858 = vmatprep.subr.mxu0 0.0
    %859 = vmatpush1.msra.mxu0 %v400
    %860 = vmatprep.subr.mxu0 0.0
    %861 = vmatpush1.msra.mxu0 %v401
    %862 = vmatprep.subr.mxu0 0.0
    %863 = vmatpush1.msra.mxu0 %v402
    %864 = vmatprep.subr.mxu0 0.0
    %865 = vmatpush1.msra.mxu0 %v403
    %866 = vmatprep.subr.mxu0 0.0
    %867 = vmatpush1.msra.mxu0 %v404
    %868 = vmatprep.subr.mxu0 0.0
    %869 = vmatpush1.msra.mxu0 %v405
    %870 = vmatprep.subr.mxu0 0.0
    %871 = vmatpush1.msra.mxu0 %v406
    %872 = vmatprep.subr.mxu0 0.0
    %873 = vmatpush1.msra.mxu0 %v407
    %874 = vmatprep.subr.mxu0 0.0
    %875 = vmatpush1.msra.mxu0 %v408
    %876 = vmatprep.subr.mxu0 0.0
    %877 = vmatpush1.msra.mxu0 %v409
    %878 = vmatprep.subr.mxu0 0.0
    %879 = vmatpush1.msra.mxu0 %v410
    %880 = vmatprep.subr.mxu0 0.0
    %881 = vmatpush1.msra.mxu0 %v411
    %882 = vmatprep.subr.mxu0 0.0
    %883 = vmatpush1.msra.mxu0 %v412
    %884 = vmatprep.subr.mxu0 0.0
    %885 = vmatpush1.msra.mxu0 %v413
    %886 = vmatprep.mubr.f32.mxu0 %v34
    %887 = vmatmul.mubr.f32.gmra.mrb[0].mxu0 %v33
    %v888 = vpop.f32.mrb[0].mxu0
    %v889 = vadd.f32 %v679, %v888
    %v890 = vpop.f32.mrb[0].mxu0
    %891 = vmatprep.mubr.f32.mxu0 %v45
    %892 = vmatmul.mubr.f32.gmra.mrb[0].mxu0 %v44
    %v893 = vpop.f32.mrb[0].mxu0
    %v894 = vadd.f32 %v684, %v893
    %v895 = vpop.f32.mrb[0].mxu0
    %896 = vmatprep.mubr.f32.mxu0 %v56
    %897 = vmatmul.mubr.f32.gmra.mrb[0].mxu0 %v55
    %v898 = vpop.f32.mrb[0].mxu0
    %v899 = vadd.f32 %v689, %v898
    %v900 = vpop.f32.mrb[0].mxu0
    %901 = vmatprep.mubr.f32.mxu0 %v67
    %902 = vmatmul.mubr.f32.gmra.mrb[0].mxu0 %v66
    %v903 = vpop.f32.mrb[0].mxu0
    %v904 = vadd.f32 %v694, %v903
    %v905 = vpop.f32.mrb[0].mxu0
    %906 = vmatprep.mubr.f32.mxu0 %v78
    %907 = vmatmul.mubr.f32.gmra.mrb[0].mxu0 %v77
    %v908 = vpop.f32.mrb[0].mxu0
    %v909 = vadd.f32 %v699, %v908
    %v910 = vpop.f32.mrb[0].mxu0
    %911 = vmatprep.mubr.f32.mxu0 %v89
    %912 = vmatmul.mubr.f32.gmra.mrb[0].mxu0 %v88
    %v913 = vpop.f32.mrb[0].mxu0
    %v914 = vadd.f32 %v704, %v913
    %v915 = vpop.f32.mrb[0].mxu0
    %916 = vmatprep.mubr.f32.mxu0 %v100
    %917 = vmatmul.mubr.f32.gmra.mrb[0].mxu0 %v99
    %v918 = vpop.f32.mrb[0].mxu0
    %v919 = vadd.f32 %v709, %v918
    %v920 = vpop.f32.mrb[0].mxu0
    %921 = vmatprep.mubr.f32.mxu0 %v111
    %922 = vmatmul.mubr.f32.gmra.mrb[0].mxu0 %v110
    %v923 = vpop.f32.mrb[0].mxu0
    %v924 = vadd.f32 %v714, %v923
    %v925 = vpop.f32.mrb[0].mxu0
    %926 = vmatprep.mubr.f32.mxu0 %v122
    %927 = vmatmul.mubr.f32.gmra.mrb[0].mxu0 %v121
    %v928 = vpop.f32.mrb[0].mxu0
    %v929 = vadd.f32 %v719, %v928
    %v930 = vpop.f32.mrb[0].mxu0
    %931 = vmatprep.mubr.f32.mxu0 %v133
    %932 = vmatmul.mubr.f32.gmra.mrb[0].mxu0 %v132
    %v933 = vpop.f32.mrb[0].mxu0
    %v934 = vadd.f32 %v724, %v933
    %v935 = vpop.f32.mrb[0].mxu0
    %936 = vmatprep.mubr.f32.mxu0 %v144
    %937 = vmatmul.mubr.f32.gmra.mrb[0].mxu0 %v143
    %v938 = vpop.f32.mrb[0].mxu0
    %v939 = vadd.f32 %v729, %v938
    %v940 = vpop.f32.mrb[0].mxu0
    %941 = vmatprep.mubr.f32.mxu0 %v155
    %942 = vmatmul.mubr.f32.gmra.mrb[0].mxu0 %v154
    %v943 = vpop.f32.mrb[0].mxu0
    %v944 = vadd.f32 %v734, %v943
    %v945 = vpop.f32.mrb[0].mxu0
    %946 = vmatprep.mubr.f32.mxu0 %v166
    %947 = vmatmul.mubr.f32.gmra.mrb[0].mxu0 %v165
    %v948 = vpop.f32.mrb[0].mxu0
    %v949 = vadd.f32 %v739, %v948
    %v950 = vpop.f32.mrb[0].mxu0
    %951 = vmatprep.mubr.f32.mxu0 %v177
    %952 = vmatmul.mubr.f32.gmra.mrb[0].mxu0 %v176
    %v953 = vpop.f32.mrb[0].mxu0
    %v954 = vadd.f32 %v744, %v953
    %v955 = vpop.f32.mrb[0].mxu0
    %956 = vmatprep.mubr.f32.mxu0 %v188
    %957 = vmatmul.mubr.f32.gmra.mrb[0].mxu0 %v187
    %v958 = vpop.f32.mrb[0].mxu0
    %v959 = vadd.f32 %v749, %v958
    %v960 = vpop.f32.mrb[0].mxu0
    %961 = vmatprep.mubr.f32.mxu0 %v199
    %962 = vmatmul.mubr.f32.gmra.mrb[0].mxu0 %v198
    %v963 = vpop.f32.mrb[0].mxu0
    %v964 = vadd.f32 %v754, %v963
    %v965 = vpop.f32.mrb[0].mxu0
    %966 = vmatprep.mubr.f32.mxu0 %v210
    %967 = vmatmul.mubr.f32.gmra.mrb[0].mxu0 %v209
    %v968 = vpop.f32.mrb[0].mxu0
    %v969 = vadd.f32 %v759, %v968
    %v970 = vpop.f32.mrb[0].mxu0
    %971 = vmatprep.mubr.f32.mxu0 %v221
    %972 = vmatmul.mubr.f32.gmra.mrb[0].mxu0 %v220
    %v973 = vpop.f32.mrb[0].mxu0
    %v974 = vadd.f32 %v764, %v973
    %v975 = vpop.f32.mrb[0].mxu0
    %976 = vmatprep.mubr.f32.mxu0 %v232
    %977 = vmatmul.mubr.f32.gmra.mrb[0].mxu0 %v231
    %v978 = vpop.f32.mrb[0].mxu0
    %v979 = vadd.f32 %v769, %v978
    %v980 = vpop.f32.mrb[0].mxu0
    %981 = vmatprep.mubr.f32.mxu0 %v243
    %982 = vmatmul.mubr.f32.gmra.mrb[0].mxu0 %v242
    %v983 = vpop.f32.mrb[0].mxu0
    %v984 = vadd.f32 %v774, %v983
    %v985 = vpop.f32.mrb[0].mxu0
    %986 = vmatprep.mubr.f32.mxu0 %v254
    %987 = vmatmul.mubr.f32.gmra.mrb[0].mxu0 %v253
    %v988 = vpop.f32.mrb[0].mxu0
    %v989 = vadd.f32 %v779, %v988
    %v990 = vpop.f32.mrb[0].mxu0
    %991 = vmatprep.mubr.f32.mxu0 %v265
    %992 = vmatmul.mubr.f32.gmra.mrb[0].mxu0 %v264
    %v993 = vpop.f32.mrb[0].mxu0
    %v994 = vadd.f32 %v784, %v993
    %v995 = vpop.f32.mrb[0].mxu0
    %996 = vmatprep.mubr.f32.mxu0 %v276
    %997 = vmatmul.mubr.f32.gmra.mrb[0].mxu0 %v275
    %v998 = vpop.f32.mrb[0].mxu0
    %v999 = vadd.f32 %v789, %v998
    %v1000 = vpop.f32.mrb[0].mxu0
    %1001 = vmatprep.mubr.f32.mxu0 %v287
    %1002 = vmatmul.mubr.f32.gmra.mrb[0].mxu0 %v286
    %v1003 = vpop.f32.mrb[0].mxu0
    %v1004 = vadd.f32 %v794, %v1003
    %v1005 = vpop.f32.mrb[0].mxu0
    %1006 = vmatprep.mubr.f32.mxu0 %v298
    %1007 = vmatmul.mubr.f32.gmra.mrb[0].mxu0 %v297
    %v1008 = vpop.f32.mrb[0].mxu0
    %v1009 = vadd.f32 %v799, %v1008
    %v1010 = vpop.f32.mrb[0].mxu0
    %1011 = vmatprep.mubr.f32.mxu0 %v309
    %1012 = vmatmul.mubr.f32.gmra.mrb[0].mxu0 %v308
    %v1013 = vpop.f32.mrb[0].mxu0
    %v1014 = vadd.f32 %v804, %v1013
    %v1015 = vpop.f32.mrb[0].mxu0
    %1016 = vmatprep.mubr.f32.mxu0 %v320
    %1017 = vmatmul.mubr.f32.gmra.mrb[0].mxu0 %v319
    %v1018 = vpop.f32.mrb[0].mxu0
    %v1019 = vadd.f32 %v809, %v1018
    %v1020 = vpop.f32.mrb[0].mxu0
    %1021 = vmatprep.mubr.f32.mxu0 %v331
    %1022 = vmatmul.mubr.f32.gmra.mrb[0].mxu0 %v330
    %v1023 = vpop.f32.mrb[0].mxu0
    %v1024 = vadd.f32 %v814, %v1023
    %v1025 = vpop.f32.mrb[0].mxu0
    %1026 = vmatprep.mubr.f32.mxu0 %v342
    %1027 = vmatmul.mubr.f32.gmra.mrb[0].mxu0 %v341
    %v1028 = vpop.f32.mrb[0].mxu0
    %v1029 = vadd.f32 %v819, %v1028
    %v1030 = vpop.f32.mrb[0].mxu0
    %1031 = vdwg.mxu0
    %1032 = vmatprep.subr.mxu0 0.0
    %1033 = vmatpush1.msra.mxu0 %v414
    %1034 = vmatprep.subr.mxu0 0.0
    %1035 = vmatpush1.msra.mxu0 %v415
    %1036 = vmatprep.subr.mxu0 0.0
    %1037 = vmatpush1.msra.mxu0 %v416
    %1038 = vmatprep.subr.mxu0 0.0
    %1039 = vmatpush1.msra.mxu0 %v417
    %1040 = vmatprep.subr.mxu0 0.0
    %1041 = vmatpush1.msra.mxu0 %v418
    %1042 = vmatprep.subr.mxu0 0.0
    %1043 = vmatpush1.msra.mxu0 %v419
    %1044 = vmatprep.subr.mxu0 0.0
    %1045 = vmatpush1.msra.mxu0 %v420
    %1046 = vmatprep.subr.mxu0 0.0
    %1047 = vmatpush1.msra.mxu0 %v421
    %1048 = vmatprep.subr.mxu0 0.0
    %1049 = vmatpush1.msra.mxu0 %v422
    %1050 = vmatprep.subr.mxu0 0.0
    %1051 = vmatpush1.msra.mxu0 %v423
    %1052 = vmatprep.subr.mxu0 0.0
    %1053 = vmatpush1.msra.mxu0 %v424
    %1054 = vmatprep.subr.mxu0 0.0
    %1055 = vmatpush1.msra.mxu0 %v425
    %1056 = vmatprep.subr.mxu0 0.0
    %1057 = vmatpush1.msra.mxu0 %v426
    %1058 = vmatprep.subr.mxu0 0.0
    %1059 = vmatpush1.msra.mxu0 %v427
    %1060 = vmatprep.subr.mxu0 0.0
    %1061 = vmatpush1.msra.mxu0 %v428
    %1062 = vmatprep.subr.mxu0 0.0
    %1063 = vmatpush1.msra.mxu0 %v429
    %1064 = vmatprep.subr.mxu0 0.0
    %1065 = vmatpush1.msra.mxu0 %v430
    %1066 = vmatprep.subr.mxu0 0.0
    %1067 = vmatpush1.msra.mxu0 %v431
    %1068 = vmatprep.subr.mxu0 0.0
    %1069 = vmatpush1.msra.mxu0 %v432
    %1070 = vmatprep.subr.mxu0 0.0
    %1071 = vmatpush1.msra.mxu0 %v433
    %1072 = vmatprep.subr.mxu0 0.0
    %1073 = vmatpush1.msra.mxu0 %v434
    %1074 = vmatprep.subr.mxu0 0.0
    %1075 = vmatpush1.msra.mxu0 %v435
    %1076 = vmatprep.subr.mxu0 0.0
    %1077 = vmatpush1.msra.mxu0 %v436
    %1078 = vmatprep.subr.mxu0 0.0
    %1079 = vmatpush1.msra.mxu0 %v437
    %1080 = vmatprep.subr.mxu0 0.0
    %1081 = vmatpush1.msra.mxu0 %v438
    %1082 = vmatprep.subr.mxu0 0.0
    %1083 = vmatpush1.msra.mxu0 %v439
    %1084 = vmatprep.subr.mxu0 0.0
    %1085 = vmatpush1.msra.mxu0 %v440
    %1086 = vmatprep.subr.mxu0 0.0
    %1087 = vmatpush1.msra.mxu0 %v441
    %1088 = vmatprep.subr.mxu0 0.0
    %1089 = vmatpush1.msra.mxu0 %v442
    %1090 = vmatprep.subr.mxu0 0.0
    %1091 = vmatpush1.msra.mxu0 %v443
    %1092 = vmatprep.subr.mxu0 0.0
    %1093 = vmatpush1.msra.mxu0 %v444
    %1094 = vmatprep.subr.mxu0 0.0
    %1095 = vmatpush1.msra.mxu0 %v445
    %1096 = vmatprep.mubr.f32.mxu0 %v36
    %1097 = vmatmul.mubr.f32.gmra.mrb[0].mxu0 %v35
    %v1098 = vpop.f32.mrb[0].mxu0
    %v1099 = vadd.f32 %v889, %v1098
    %v1100 = vpop.f32.mrb[0].mxu0
    %1101 = vmatprep.mubr.f32.mxu0 %v47
    %1102 = vmatmul.mubr.f32.gmra.mrb[0].mxu0 %v46
    %v1103 = vpop.f32.mrb[0].mxu0
    %v1104 = vadd.f32 %v894, %v1103
    %v1105 = vpop.f32.mrb[0].mxu0
    %1106 = vmatprep.mubr.f32.mxu0 %v58
    %1107 = vmatmul.mubr.f32.gmra.mrb[0].mxu0 %v57
    %v1108 = vpop.f32.mrb[0].mxu0
    %v1109 = vadd.f32 %v899, %v1108
    %v1110 = vpop.f32.mrb[0].mxu0
    %1111 = vmatprep.mubr.f32.mxu0 %v69
    %1112 = vmatmul.mubr.f32.gmra.mrb[0].mxu0 %v68
    %v1113 = vpop.f32.mrb[0].mxu0
    %v1114 = vadd.f32 %v904, %v1113
    %v1115 = vpop.f32.mrb[0].mxu0
    %1116 = vmatprep.mubr.f32.mxu0 %v80
    %1117 = vmatmul.mubr.f32.gmra.mrb[0].mxu0 %v79
    %v1118 = vpop.f32.mrb[0].mxu0
    %v1119 = vadd.f32 %v909, %v1118
    %v1120 = vpop.f32.mrb[0].mxu0
    %1121 = vmatprep.mubr.f32.mxu0 %v91
    %1122 = vmatmul.mubr.f32.gmra.mrb[0].mxu0 %v90
    %v1123 = vpop.f32.mrb[0].mxu0
    %v1124 = vadd.f32 %v914, %v1123
    %v1125 = vpop.f32.mrb[0].mxu0
    %1126 = vmatprep.mubr.f32.mxu0 %v102
    %1127 = vmatmul.mubr.f32.gmra.mrb[0].mxu0 %v101
    %v1128 = vpop.f32.mrb[0].mxu0
    %v1129 = vadd.f32 %v919, %v1128
    %v1130 = vpop.f32.mrb[0].mxu0
    %1131 = vmatprep.mubr.f32.mxu0 %v113
    %1132 = vmatmul.mubr.f32.gmra.mrb[0].mxu0 %v112
    %v1133 = vpop.f32.mrb[0].mxu0
    %v1134 = vadd.f32 %v924, %v1133
    %v1135 = vpop.f32.mrb[0].mxu0
    %1136 = vmatprep.mubr.f32.mxu0 %v124
    %1137 = vmatmul.mubr.f32.gmra.mrb[0].mxu0 %v123
    %v1138 = vpop.f32.mrb[0].mxu0
    %v1139 = vadd.f32 %v929, %v1138
    %v1140 = vpop.f32.mrb[0].mxu0
    %1141 = vmatprep.mubr.f32.mxu0 %v135
    %1142 = vmatmul.mubr.f32.gmra.mrb[0].mxu0 %v134
    %v1143 = vpop.f32.mrb[0].mxu0
    %v1144 = vadd.f32 %v934, %v1143
    %v1145 = vpop.f32.mrb[0].mxu0
    %1146 = vmatprep.mubr.f32.mxu0 %v146
    %1147 = vmatmul.mubr.f32.gmra.mrb[0].mxu0 %v145
    %v1148 = vpop.f32.mrb[0].mxu0
    %v1149 = vadd.f32 %v939, %v1148
    %v1150 = vpop.f32.mrb[0].mxu0
    %1151 = vmatprep.mubr.f32.mxu0 %v157
    %1152 = vmatmul.mubr.f32.gmra.mrb[0].mxu0 %v156
    %v1153 = vpop.f32.mrb[0].mxu0
    %v1154 = vadd.f32 %v944, %v1153
    %v1155 = vpop.f32.mrb[0].mxu0
    %1156 = vmatprep.mubr.f32.mxu0 %v168
    %1157 = vmatmul.mubr.f32.gmra.mrb[0].mxu0 %v167
    %v1158 = vpop.f32.mrb[0].mxu0
    %v1159 = vadd.f32 %v949, %v1158
    %v1160 = vpop.f32.mrb[0].mxu0
    %1161 = vmatprep.mubr.f32.mxu0 %v179
    %1162 = vmatmul.mubr.f32.gmra.mrb[0].mxu0 %v178
    %v1163 = vpop.f32.mrb[0].mxu0
    %v1164 = vadd.f32 %v954, %v1163
    %v1165 = vpop.f32.mrb[0].mxu0
    %1166 = vmatprep.mubr.f32.mxu0 %v190
    %1167 = vmatmul.mubr.f32.gmra.mrb[0].mxu0 %v189
    %v1168 = vpop.f32.mrb[0].mxu0
    %v1169 = vadd.f32 %v959, %v1168
    %v1170 = vpop.f32.mrb[0].mxu0
    %1171 = vmatprep.mubr.f32.mxu0 %v201
    %1172 = vmatmul.mubr.f32.gmra.mrb[0].mxu0 %v200
    %v1173 = vpop.f32.mrb[0].mxu0
    %v1174 = vadd.f32 %v964, %v1173
    %v1175 = vpop.f32.mrb[0].mxu0
    %1176 = vmatprep.mubr.f32.mxu0 %v212
    %1177 = vmatmul.mubr.f32.gmra.mrb[0].mxu0 %v211
    %v1178 = vpop.f32.mrb[0].mxu0
    %v1179 = vadd.f32 %v969, %v1178
    %v1180 = vpop.f32.mrb[0].mxu0
    %1181 = vmatprep.mubr.f32.mxu0 %v223
    %1182 = vmatmul.mubr.f32.gmra.mrb[0].mxu0 %v222
    %v1183 = vpop.f32.mrb[0].mxu0
    %v1184 = vadd.f32 %v974, %v1183
    %v1185 = vpop.f32.mrb[0].mxu0
    %1186 = vmatprep.mubr.f32.mxu0 %v234
    %1187 = vmatmul.mubr.f32.gmra.mrb[0].mxu0 %v233
    %v1188 = vpop.f32.mrb[0].mxu0
    %v1189 = vadd.f32 %v979, %v1188
    %v1190 = vpop.f32.mrb[0].mxu0
    %1191 = vmatprep.mubr.f32.mxu0 %v245
    %1192 = vmatmul.mubr.f32.gmra.mrb[0].mxu0 %v244
    %v1193 = vpop.f32.mrb[0].mxu0
    %v1194 = vadd.f32 %v984, %v1193
    %v1195 = vpop.f32.mrb[0].mxu0
    %1196 = vmatprep.mubr.f32.mxu0 %v256
    %1197 = vmatmul.mubr.f32.gmra.mrb[0].mxu0 %v255
    %v1198 = vpop.f32.mrb[0].mxu0
    %v1199 = vadd.f32 %v989, %v1198
    %v1200 = vpop.f32.mrb[0].mxu0
    %1201 = vmatprep.mubr.f32.mxu0 %v267
    %1202 = vmatmul.mubr.f32.gmra.mrb[0].mxu0 %v266
    %v1203 = vpop.f32.mrb[0].mxu0
    %v1204 = vadd.f32 %v994, %v1203
    %v1205 = vpop.f32.mrb[0].mxu0
    %1206 = vmatprep.mubr.f32.mxu0 %v278
    %1207 = vmatmul.mubr.f32.gmra.mrb[0].mxu0 %v277
    %v1208 = vpop.f32.mrb[0].mxu0
    %v1209 = vadd.f32 %v999, %v1208
    %v1210 = vpop.f32.mrb[0].mxu0
    %1211 = vmatprep.mubr.f32.mxu0 %v289
    %1212 = vmatmul.mubr.f32.gmra.mrb[0].mxu0 %v288
    %v1213 = vpop.f32.mrb[0].mxu0
    %v1214 = vadd.f32 %v1004, %v1213
    %v1215 = vpop.f32.mrb[0].mxu0
    %1216 = vmatprep.mubr.f32.mxu0 %v300
    %1217 = vmatmul.mubr.f32.gmra.mrb[0].mxu0 %v299
    %v1218 = vpop.f32.mrb[0].mxu0
    %v1219 = vadd.f32 %v1009, %v1218
    %v1220 = vpop.f32.mrb[0].mxu0
    %1221 = vmatprep.mubr.f32.mxu0 %v311
    %1222 = vmatmul.mubr.f32.gmra.mrb[0].mxu0 %v310
    %v1223 = vpop.f32.mrb[0].mxu0
    %v1224 = vadd.f32 %v1014, %v1223
    %v1225 = vpop.f32.mrb[0].mxu0
    %1226 = vmatprep.mubr.f32.mxu0 %v322
    %1227 = vmatmul.mubr.f32.gmra.mrb[0].mxu0 %v321
    %v1228 = vpop.f32.mrb[0].mxu0
    %v1229 = vadd.f32 %v1019, %v1228
    %v1230 = vpop.f32.mrb[0].mxu0
    %1231 = vmatprep.mubr.f32.mxu0 %v333
    %1232 = vmatmul.mubr.f32.gmra.mrb[0].mxu0 %v332
    %v1233 = vpop.f32.mrb[0].mxu0
    %v1234 = vadd.f32 %v1024, %v1233
    %v1235 = vpop.f32.mrb[0].mxu0
    %1236 = vmatprep.mubr.f32.mxu0 %v344
    %1237 = vmatmul.mubr.f32.gmra.mrb[0].mxu0 %v343
    %v1238 = vpop.f32.mrb[0].mxu0
    %v1239 = vadd.f32 %v1029, %v1238
    %v1240 = vpop.f32.mrb[0].mxu0
    %1241 = vdwg.mxu0
    %1242 = vmatprep.subr.mxu0 0.0
    %1243 = vmatpush1.msra.mxu0 %v446
    %1244 = vmatprep.subr.mxu0 0.0
    %1245 = vmatpush1.msra.mxu0 %v447
    %1246 = vmatprep.subr.mxu0 0.0
    %1247 = vmatpush1.msra.mxu0 %v448
    %1248 = vmatprep.subr.mxu0 0.0
    %1249 = vmatpush1.msra.mxu0 %v449
    %1250 = vmatprep.subr.mxu0 0.0
    %1251 = vmatpush1.msra.mxu0 %v450
    %1252 = vmatprep.subr.mxu0 0.0
    %1253 = vmatpush1.msra.mxu0 %v451
    %1254 = vmatprep.subr.mxu0 0.0
    %1255 = vmatpush1.msra.mxu0 %v452
    %1256 = vmatprep.subr.mxu0 0.0
    %1257 = vmatpush1.msra.mxu0 %v453
    %1258 = vmatprep.subr.mxu0 0.0
    %1259 = vmatpush1.msra.mxu0 %v454
    %1260 = vmatprep.subr.mxu0 0.0
    %1261 = vmatpush1.msra.mxu0 %v455
    %1262 = vmatprep.subr.mxu0 0.0
    %1263 = vmatpush1.msra.mxu0 %v456
    %1264 = vmatprep.subr.mxu0 0.0
    %1265 = vmatpush1.msra.mxu0 %v457
    %1266 = vmatprep.subr.mxu0 0.0
    %1267 = vmatpush1.msra.mxu0 %v458
    %1268 = vmatprep.subr.mxu0 0.0
    %1269 = vmatpush1.msra.mxu0 %v459
    %1270 = vmatprep.subr.mxu0 0.0
    %1271 = vmatpush1.msra.mxu0 %v460
    %1272 = vmatprep.subr.mxu0 0.0
    %1273 = vmatpush1.msra.mxu0 %v461
    %1274 = vmatprep.subr.mxu0 0.0
    %1275 = vmatpush1.msra.mxu0 %v462
    %1276 = vmatprep.subr.mxu0 0.0
    %1277 = vmatpush1.msra.mxu0 %v463
    %1278 = vmatprep.subr.mxu0 0.0
    %1279 = vmatpush1.msra.mxu0 %v464
    %1280 = vmatprep.subr.mxu0 0.0
    %1281 = vmatpush1.msra.mxu0 %v465
    %1282 = vmatprep.subr.mxu0 0.0
    %1283 = vmatpush1.msra.mxu0 %v466
    %1284 = vmatprep.subr.mxu0 0.0
    %1285 = vmatpush1.msra.mxu0 %v467
    %1286 = vmatprep.subr.mxu0 0.0
    %1287 = vmatpush1.msra.mxu0 %v468
    %1288 = vmatprep.subr.mxu0 0.0
    %1289 = vmatpush1.msra.mxu0 %v469
    %1290 = vmatprep.subr.mxu0 0.0
    %1291 = vmatpush1.msra.mxu0 %v470
    %1292 = vmatprep.subr.mxu0 0.0
    %1293 = vmatpush1.msra.mxu0 %v471
    %1294 = vmatprep.subr.mxu0 0.0
    %1295 = vmatpush1.msra.mxu0 %v472
    %1296 = vmatprep.subr.mxu0 0.0
    %1297 = vmatpush1.msra.mxu0 %v473
    %1298 = vmatprep.subr.mxu0 0.0
    %1299 = vmatpush1.msra.mxu0 %v474
    %1300 = vmatprep.subr.mxu0 0.0
    %1301 = vmatpush1.msra.mxu0 %v475
    %1302 = vmatprep.subr.mxu0 0.0
    %1303 = vmatpush1.msra.mxu0 %v476
    %1304 = vmatprep.subr.mxu0 0.0
    %1305 = vmatpush1.msra.mxu0 %v477
    %1306 = vmatprep.mubr.f32.mxu0 %v38
    %1307 = vmatmul.mubr.f32.gmra.mrb[0].mxu0 %v37
    %v1308 = vpop.f32.mrb[0].mxu0
    %v1309 = vadd.f32 %v1099, %v1308
    %v1310 = vpop.f32.mrb[0].mxu0
    %1311 = vmatprep.mubr.f32.mxu0 %v49
    %1312 = vmatmul.mubr.f32.gmra.mrb[0].mxu0 %v48
    %v1313 = vpop.f32.mrb[0].mxu0
    %v1314 = vadd.f32 %v1104, %v1313
    %v1315 = vpop.f32.mrb[0].mxu0
    %1316 = vmatprep.mubr.f32.mxu0 %v60
    %1317 = vmatmul.mubr.f32.gmra.mrb[0].mxu0 %v59
    %v1318 = vpop.f32.mrb[0].mxu0
    %v1319 = vadd.f32 %v1109, %v1318
    %v1320 = vpop.f32.mrb[0].mxu0
    %1321 = vmatprep.mubr.f32.mxu0 %v71
    %1322 = vmatmul.mubr.f32.gmra.mrb[0].mxu0 %v70
    %v1323 = vpop.f32.mrb[0].mxu0
    %v1324 = vadd.f32 %v1114, %v1323
    %v1325 = vpop.f32.mrb[0].mxu0
    %1326 = vmatprep.mubr.f32.mxu0 %v82
    %1327 = vmatmul.mubr.f32.gmra.mrb[0].mxu0 %v81
    %v1328 = vpop.f32.mrb[0].mxu0
    %v1329 = vadd.f32 %v1119, %v1328
    %v1330 = vpop.f32.mrb[0].mxu0
    %1331 = vmatprep.mubr.f32.mxu0 %v93
    %1332 = vmatmul.mubr.f32.gmra.mrb[0].mxu0 %v92
    %v1333 = vpop.f32.mrb[0].mxu0
    %v1334 = vadd.f32 %v1124, %v1333
    %v1335 = vpop.f32.mrb[0].mxu0
    %1336 = vmatprep.mubr.f32.mxu0 %v104
    %1337 = vmatmul.mubr.f32.gmra.mrb[0].mxu0 %v103
    %v1338 = vpop.f32.mrb[0].mxu0
    %v1339 = vadd.f32 %v1129, %v1338
    %v1340 = vpop.f32.mrb[0].mxu0
    %1341 = vmatprep.mubr.f32.mxu0 %v115
    %1342 = vmatmul.mubr.f32.gmra.mrb[0].mxu0 %v114
    %v1343 = vpop.f32.mrb[0].mxu0
    %v1344 = vadd.f32 %v1134, %v1343
    %v1345 = vpop.f32.mrb[0].mxu0
    %1346 = vmatprep.mubr.f32.mxu0 %v126
    %1347 = vmatmul.mubr.f32.gmra.mrb[0].mxu0 %v125
    %v1348 = vpop.f32.mrb[0].mxu0
    %v1349 = vadd.f32 %v1139, %v1348
    %v1350 = vpop.f32.mrb[0].mxu0
    %1351 = vmatprep.mubr.f32.mxu0 %v137
    %1352 = vmatmul.mubr.f32.gmra.mrb[0].mxu0 %v136
    %v1353 = vpop.f32.mrb[0].mxu0
    %v1354 = vadd.f32 %v1144, %v1353
    %v1355 = vpop.f32.mrb[0].mxu0
    %1356 = vmatprep.mubr.f32.mxu0 %v148
    %1357 = vmatmul.mubr.f32.gmra.mrb[0].mxu0 %v147
    %v1358 = vpop.f32.mrb[0].mxu0
    %v1359 = vadd.f32 %v1149, %v1358
    %v1360 = vpop.f32.mrb[0].mxu0
    %1361 = vmatprep.mubr.f32.mxu0 %v159
    %1362 = vmatmul.mubr.f32.gmra.mrb[0].mxu0 %v158
    %v1363 = vpop.f32.mrb[0].mxu0
    %v1364 = vadd.f32 %v1154, %v1363
    %v1365 = vpop.f32.mrb[0].mxu0
    %1366 = vmatprep.mubr.f32.mxu0 %v170
    %1367 = vmatmul.mubr.f32.gmra.mrb[0].mxu0 %v169
    %v1368 = vpop.f32.mrb[0].mxu0
    %v1369 = vadd.f32 %v1159, %v1368
    %v1370 = vpop.f32.mrb[0].mxu0
    %1371 = vmatprep.mubr.f32.mxu0 %v181
    %1372 = vmatmul.mubr.f32.gmra.mrb[0].mxu0 %v180
    %v1373 = vpop.f32.mrb[0].mxu0
    %v1374 = vadd.f32 %v1164, %v1373
    %v1375 = vpop.f32.mrb[0].mxu0
    %1376 = vmatprep.mubr.f32.mxu0 %v192
    %1377 = vmatmul.mubr.f32.gmra.mrb[0].mxu0 %v191
    %v1378 = vpop.f32.mrb[0].mxu0
    %v1379 = vadd.f32 %v1169, %v1378
    %v1380 = vpop.f32.mrb[0].mxu0
    %1381 = vmatprep.mubr.f32.mxu0 %v203
    %1382 = vmatmul.mubr.f32.gmra.mrb[0].mxu0 %v202
    %v1383 = vpop.f32.mrb[0].mxu0
    %v1384 = vadd.f32 %v1174, %v1383
    %v1385 = vpop.f32.mrb[0].mxu0
    %1386 = vmatprep.mubr.f32.mxu0 %v214
    %1387 = vmatmul.mubr.f32.gmra.mrb[0].mxu0 %v213
    %v1388 = vpop.f32.mrb[0].mxu0
    %v1389 = vadd.f32 %v1179, %v1388
    %v1390 = vpop.f32.mrb[0].mxu0
    %1391 = vmatprep.mubr.f32.mxu0 %v225
    %1392 = vmatmul.mubr.f32.gmra.mrb[0].mxu0 %v224
    %v1393 = vpop.f32.mrb[0].mxu0
    %v1394 = vadd.f32 %v1184, %v1393
    %v1395 = vpop.f32.mrb[0].mxu0
    %1396 = vmatprep.mubr.f32.mxu0 %v236
    %1397 = vmatmul.mubr.f32.gmra.mrb[0].mxu0 %v235
    %v1398 = vpop.f32.mrb[0].mxu0
    %v1399 = vadd.f32 %v1189, %v1398
    %v1400 = vpop.f32.mrb[0].mxu0
    %1401 = vmatprep.mubr.f32.mxu0 %v247
    %1402 = vmatmul.mubr.f32.gmra.mrb[0].mxu0 %v246
    %v1403 = vpop.f32.mrb[0].mxu0
    %v1404 = vadd.f32 %v1194, %v1403
    %v1405 = vpop.f32.mrb[0].mxu0
    %1406 = vmatprep.mubr.f32.mxu0 %v258
    %1407 = vmatmul.mubr.f32.gmra.mrb[0].mxu0 %v257
    %v1408 = vpop.f32.mrb[0].mxu0
    %v1409 = vadd.f32 %v1199, %v1408
    %v1410 = vpop.f32.mrb[0].mxu0
    %1411 = vmatprep.mubr.f32.mxu0 %v269
    %1412 = vmatmul.mubr.f32.gmra.mrb[0].mxu0 %v268
    %v1413 = vpop.f32.mrb[0].mxu0
    %v1414 = vadd.f32 %v1204, %v1413
    %v1415 = vpop.f32.mrb[0].mxu0
    %1416 = vmatprep.mubr.f32.mxu0 %v280
    %1417 = vmatmul.mubr.f32.gmra.mrb[0].mxu0 %v279
    %v1418 = vpop.f32.mrb[0].mxu0
    %v1419 = vadd.f32 %v1209, %v1418
    %v1420 = vpop.f32.mrb[0].mxu0
    %1421 = vmatprep.mubr.f32.mxu0 %v291
    %1422 = vmatmul.mubr.f32.gmra.mrb[0].mxu0 %v290
    %v1423 = vpop.f32.mrb[0].mxu0
    %v1424 = vadd.f32 %v1214, %v1423
    %v1425 = vpop.f32.mrb[0].mxu0
    %1426 = vmatprep.mubr.f32.mxu0 %v302
    %1427 = vmatmul.mubr.f32.gmra.mrb[0].mxu0 %v301
    %v1428 = vpop.f32.mrb[0].mxu0
    %v1429 = vadd.f32 %v1219, %v1428
    %v1430 = vpop.f32.mrb[0].mxu0
    %1431 = vmatprep.mubr.f32.mxu0 %v313
    %1432 = vmatmul.mubr.f32.gmra.mrb[0].mxu0 %v312
    %v1433 = vpop.f32.mrb[0].mxu0
    %v1434 = vadd.f32 %v1224, %v1433
    %v1435 = vpop.f32.mrb[0].mxu0
    %1436 = vmatprep.mubr.f32.mxu0 %v324
    %1437 = vmatmul.mubr.f32.gmra.mrb[0].mxu0 %v323
    %v1438 = vpop.f32.mrb[0].mxu0
    %v1439 = vadd.f32 %v1229, %v1438
    %v1440 = vpop.f32.mrb[0].mxu0
    %1441 = vmatprep.mubr.f32.mxu0 %v335
    %1442 = vmatmul.mubr.f32.gmra.mrb[0].mxu0 %v334
    %v1443 = vpop.f32.mrb[0].mxu0
    %v1444 = vadd.f32 %v1234, %v1443
    %v1445 = vpop.f32.mrb[0].mxu0
    %1446 = vmatprep.mubr.f32.mxu0 %v346
    %1447 = vmatmul.mubr.f32.gmra.mrb[0].mxu0 %v345
    %v1448 = vpop.f32.mrb[0].mxu0
    %v1449 = vadd.f32 %v1239, %v1448
    %v1450 = vpop.f32.mrb[0].mxu0
    %1451 = vdwg.mxu0
    %1452 = vmatprep.subr.mxu0 0.0
    %1453 = vmatpush1.msra.mxu0 %v478
    %1454 = vmatprep.subr.mxu0 0.0
    %1455 = vmatpush1.msra.mxu0 %v479
    %1456 = vmatprep.subr.mxu0 0.0
    %1457 = vmatpush1.msra.mxu0 %v480
    %1458 = vmatprep.subr.mxu0 0.0
    %1459 = vmatpush1.msra.mxu0 %v481
    %1460 = vmatprep.subr.mxu0 0.0
    %1461 = vmatpush1.msra.mxu0 %v482
    %1462 = vmatprep.subr.mxu0 0.0
    %1463 = vmatpush1.msra.mxu0 %v483
    %1464 = vmatprep.subr.mxu0 0.0
    %1465 = vmatpush1.msra.mxu0 %v484
    %1466 = vmatprep.subr.mxu0 0.0
    %1467 = vmatpush1.msra.mxu0 %v485
    %1468 = vmatprep.subr.mxu0 0.0
    %1469 = vmatpush1.msra.mxu0 %v486
    %1470 = vmatprep.subr.mxu0 0.0
    %1471 = vmatpush1.msra.mxu0 %v487
    %1472 = vmatprep.subr.mxu0 0.0
    %1473 = vmatpush1.msra.mxu0 %v488
    %1474 = vmatprep.subr.mxu0 0.0
    %1475 = vmatpush1.msra.mxu0 %v489
    %1476 = vmatprep.subr.mxu0 0.0
    %1477 = vmatpush1.msra.mxu0 %v490
    %1478 = vmatprep.subr.mxu0 0.0
    %1479 = vmatpush1.msra.mxu0 %v491
    %1480 = vmatprep.subr.mxu0 0.0
    %1481 = vmatpush1.msra.mxu0 %v492
    %1482 = vmatprep.subr.mxu0 0.0
    %1483 = vmatpush1.msra.mxu0 %v493
    %1484 = vmatprep.subr.mxu0 0.0
    %1485 = vmatpush1.msra.mxu0 %v494
    %1486 = vmatprep.subr.mxu0 0.0
    %1487 = vmatpush1.msra.mxu0 %v495
    %1488 = vmatprep.subr.mxu0 0.0
    %1489 = vmatpush1.msra.mxu0 %v496
    %1490 = vmatprep.subr.mxu0 0.0
    %1491 = vmatpush1.msra.mxu0 %v497
    %1492 = vmatprep.subr.mxu0 0.0
    %1493 = vmatpush1.msra.mxu0 %v498
    %1494 = vmatprep.subr.mxu0 0.0
    %1495 = vmatpush1.msra.mxu0 %v499
    %1496 = vmatprep.subr.mxu0 0.0
    %1497 = vmatpush1.msra.mxu0 %v500
    %1498 = vmatprep.subr.mxu0 0.0
    %1499 = vmatpush1.msra.mxu0 %v501
    %1500 = vmatprep.subr.mxu0 0.0
    %1501 = vmatpush1.msra.mxu0 %v502
    %1502 = vmatprep.subr.mxu0 0.0
    %1503 = vmatpush1.msra.mxu0 %v503
    %1504 = vmatprep.subr.mxu0 0.0
    %1505 = vmatpush1.msra.mxu0 %v504
    %1506 = vmatprep.subr.mxu0 0.0
    %1507 = vmatpush1.msra.mxu0 %v505
    %1508 = vmatprep.subr.mxu0 0.0
    %1509 = vmatpush1.msra.mxu0 %v506
    %1510 = vmatprep.subr.mxu0 0.0
    %1511 = vmatpush1.msra.mxu0 %v507
    %1512 = vmatprep.subr.mxu0 0.0
    %1513 = vmatpush1.msra.mxu0 %v508
    %1514 = vmatprep.subr.mxu0 0.0
    %1515 = vmatpush1.msra.mxu0 %v509
    %1516 = vmatprep.mubr.f32.mxu0 %v40
    %1517 = vmatmul.mubr.f32.gmra.mrb[0].mxu0 %v39
    %v1518 = vpop.f32.mrb[0].mxu0
    %v1519 = vadd.f32 %v1309, %v1518
    %v1520 = vpop.f32.mrb[0].mxu0
    %1521 = vmatprep.mubr.f32.mxu0 %v51
    %1522 = vmatmul.mubr.f32.gmra.mrb[0].mxu0 %v50
    %v1523 = vpop.f32.mrb[0].mxu0
    %v1524 = vadd.f32 %v1314, %v1523
    %v1525 = vpop.f32.mrb[0].mxu0
    %1526 = vmatprep.mubr.f32.mxu0 %v62
    %1527 = vmatmul.mubr.f32.gmra.mrb[0].mxu0 %v61
    %v1528 = vpop.f32.mrb[0].mxu0
    %v1529 = vadd.f32 %v1319, %v1528
    %v1530 = vpop.f32.mrb[0].mxu0
    %1531 = vmatprep.mubr.f32.mxu0 %v73
    %1532 = vmatmul.mubr.f32.gmra.mrb[0].mxu0 %v72
    %v1533 = vpop.f32.mrb[0].mxu0
    %v1534 = vadd.f32 %v1324, %v1533
    %v1535 = vpop.f32.mrb[0].mxu0
    %1536 = vmatprep.mubr.f32.mxu0 %v84
    %1537 = vmatmul.mubr.f32.gmra.mrb[0].mxu0 %v83
    %v1538 = vpop.f32.mrb[0].mxu0
    %v1539 = vadd.f32 %v1329, %v1538
    %v1540 = vpop.f32.mrb[0].mxu0
    %1541 = vmatprep.mubr.f32.mxu0 %v95
    %1542 = vmatmul.mubr.f32.gmra.mrb[0].mxu0 %v94
    %v1543 = vpop.f32.mrb[0].mxu0
    %v1544 = vadd.f32 %v1334, %v1543
    %v1545 = vpop.f32.mrb[0].mxu0
    %1546 = vmatprep.mubr.f32.mxu0 %v106
    %1547 = vmatmul.mubr.f32.gmra.mrb[0].mxu0 %v105
    %v1548 = vpop.f32.mrb[0].mxu0
    %v1549 = vadd.f32 %v1339, %v1548
    %v1550 = vpop.f32.mrb[0].mxu0
    %1551 = vmatprep.mubr.f32.mxu0 %v117
    %1552 = vmatmul.mubr.f32.gmra.mrb[0].mxu0 %v116
    %v1553 = vpop.f32.mrb[0].mxu0
    %v1554 = vadd.f32 %v1344, %v1553
    %v1555 = vpop.f32.mrb[0].mxu0
    %1556 = vmatprep.mubr.f32.mxu0 %v128
    %1557 = vmatmul.mubr.f32.gmra.mrb[0].mxu0 %v127
    %v1558 = vpop.f32.mrb[0].mxu0
    %v1559 = vadd.f32 %v1349, %v1558
    %v1560 = vpop.f32.mrb[0].mxu0
    %1561 = vmatprep.mubr.f32.mxu0 %v139
    %1562 = vmatmul.mubr.f32.gmra.mrb[0].mxu0 %v138
    %v1563 = vpop.f32.mrb[0].mxu0
    %v1564 = vadd.f32 %v1354, %v1563
    %v1565 = vpop.f32.mrb[0].mxu0
    %1566 = vmatprep.mubr.f32.mxu0 %v150
    %1567 = vmatmul.mubr.f32.gmra.mrb[0].mxu0 %v149
    %v1568 = vpop.f32.mrb[0].mxu0
    %v1569 = vadd.f32 %v1359, %v1568
    %v1570 = vpop.f32.mrb[0].mxu0
    %1571 = vmatprep.mubr.f32.mxu0 %v161
    %1572 = vmatmul.mubr.f32.gmra.mrb[0].mxu0 %v160
    %v1573 = vpop.f32.mrb[0].mxu0
    %v1574 = vadd.f32 %v1364, %v1573
    %v1575 = vpop.f32.mrb[0].mxu0
    %1576 = vmatprep.mubr.f32.mxu0 %v172
    %1577 = vmatmul.mubr.f32.gmra.mrb[0].mxu0 %v171
    %v1578 = vpop.f32.mrb[0].mxu0
    %v1579 = vadd.f32 %v1369, %v1578
    %v1580 = vpop.f32.mrb[0].mxu0
    %1581 = vmatprep.mubr.f32.mxu0 %v183
    %1582 = vmatmul.mubr.f32.gmra.mrb[0].mxu0 %v182
    %v1583 = vpop.f32.mrb[0].mxu0
    %v1584 = vadd.f32 %v1374, %v1583
    %v1585 = vpop.f32.mrb[0].mxu0
    %1586 = vmatprep.mubr.f32.mxu0 %v194
    %1587 = vmatmul.mubr.f32.gmra.mrb[0].mxu0 %v193
    %v1588 = vpop.f32.mrb[0].mxu0
    %v1589 = vadd.f32 %v1379, %v1588
    %v1590 = vpop.f32.mrb[0].mxu0
    %1591 = vmatprep.mubr.f32.mxu0 %v205
    %1592 = vmatmul.mubr.f32.gmra.mrb[0].mxu0 %v204
    %v1593 = vpop.f32.mrb[0].mxu0
    %v1594 = vadd.f32 %v1384, %v1593
    %v1595 = vpop.f32.mrb[0].mxu0
    %1596 = vmatprep.mubr.f32.mxu0 %v216
    %1597 = vmatmul.mubr.f32.gmra.mrb[0].mxu0 %v215
    %v1598 = vpop.f32.mrb[0].mxu0
    %v1599 = vadd.f32 %v1389, %v1598
    %v1600 = vpop.f32.mrb[0].mxu0
    %1601 = vmatprep.mubr.f32.mxu0 %v227
    %1602 = vmatmul.mubr.f32.gmra.mrb[0].mxu0 %v226
    %v1603 = vpop.f32.mrb[0].mxu0
    %v1604 = vadd.f32 %v1394, %v1603
    %v1605 = vpop.f32.mrb[0].mxu0
    %1606 = vmatprep.mubr.f32.mxu0 %v238
    %1607 = vmatmul.mubr.f32.gmra.mrb[0].mxu0 %v237
    %v1608 = vpop.f32.mrb[0].mxu0
    %v1609 = vadd.f32 %v1399, %v1608
    %v1610 = vpop.f32.mrb[0].mxu0
    %1611 = vmatprep.mubr.f32.mxu0 %v249
    %1612 = vmatmul.mubr.f32.gmra.mrb[0].mxu0 %v248
    %v1613 = vpop.f32.mrb[0].mxu0
    %v1614 = vadd.f32 %v1404, %v1613
    %v1615 = vpop.f32.mrb[0].mxu0
    %1616 = vmatprep.mubr.f32.mxu0 %v260
    %1617 = vmatmul.mubr.f32.gmra.mrb[0].mxu0 %v259
    %v1618 = vpop.f32.mrb[0].mxu0
    %v1619 = vadd.f32 %v1409, %v1618
    %v1620 = vpop.f32.mrb[0].mxu0
    %1621 = vmatprep.mubr.f32.mxu0 %v271
    %1622 = vmatmul.mubr.f32.gmra.mrb[0].mxu0 %v270
    %v1623 = vpop.f32.mrb[0].mxu0
    %v1624 = vadd.f32 %v1414, %v1623
    %v1625 = vpop.f32.mrb[0].mxu0
    %1626 = vmatprep.mubr.f32.mxu0 %v282
    %1627 = vmatmul.mubr.f32.gmra.mrb[0].mxu0 %v281
    %v1628 = vpop.f32.mrb[0].mxu0
    %v1629 = vadd.f32 %v1419, %v1628
    %v1630 = vpop.f32.mrb[0].mxu0
    %1631 = vmatprep.mubr.f32.mxu0 %v293
    %1632 = vmatmul.mubr.f32.gmra.mrb[0].mxu0 %v292
    %v1633 = vpop.f32.mrb[0].mxu0
    %v1634 = vadd.f32 %v1424, %v1633
    %v1635 = vpop.f32.mrb[0].mxu0
    %1636 = vmatprep.mubr.f32.mxu0 %v304
    %1637 = vmatmul.mubr.f32.gmra.mrb[0].mxu0 %v303
    %v1638 = vpop.f32.mrb[0].mxu0
    %v1639 = vadd.f32 %v1429, %v1638
    %v1640 = vpop.f32.mrb[0].mxu0
    %1641 = vmatprep.mubr.f32.mxu0 %v315
    %1642 = vmatmul.mubr.f32.gmra.mrb[0].mxu0 %v314
    %v1643 = vpop.f32.mrb[0].mxu0
    %v1644 = vadd.f32 %v1434, %v1643
    %v1645 = vpop.f32.mrb[0].mxu0
    %1646 = vmatprep.mubr.f32.mxu0 %v326
    %1647 = vmatmul.mubr.f32.gmra.mrb[0].mxu0 %v325
    %v1648 = vpop.f32.mrb[0].mxu0
    %v1649 = vadd.f32 %v1439, %v1648
    %v1650 = vpop.f32.mrb[0].mxu0
    %1651 = vmatprep.mubr.f32.mxu0 %v337
    %1652 = vmatmul.mubr.f32.gmra.mrb[0].mxu0 %v336
    %v1653 = vpop.f32.mrb[0].mxu0
    %v1654 = vadd.f32 %v1444, %v1653
    %v1655 = vpop.f32.mrb[0].mxu0
    %1656 = vmatprep.mubr.f32.mxu0 %v348
    %1657 = vmatmul.mubr.f32.gmra.mrb[0].mxu0 %v347
    %v1658 = vpop.f32.mrb[0].mxu0
    %v1659 = vadd.f32 %v1449, %v1658
    %v1660 = vpop.f32.mrb[0].mxu0
    %1661 = vdwg.mxu0
    %1662 = vmatprep.subr.mxu0 0.0
    %1663 = vmatpush1.msra.mxu0 %v510
    %1664 = vmatprep.subr.mxu0 0.0
    %1665 = vmatpush1.msra.mxu0 %v511
    %1666 = vmatprep.subr.mxu0 0.0
    %1667 = vmatpush1.msra.mxu0 %v512
    %1668 = vmatprep.subr.mxu0 0.0
    %1669 = vmatpush1.msra.mxu0 %v513
    %1670 = vmatprep.subr.mxu0 0.0
    %1671 = vmatpush1.msra.mxu0 %v514
    %1672 = vmatprep.subr.mxu0 0.0
    %1673 = vmatpush1.msra.mxu0 %v515
    %1674 = vmatprep.subr.mxu0 0.0
    %1675 = vmatpush1.msra.mxu0 %v516
    %1676 = vmatprep.subr.mxu0 0.0
    %1677 = vmatpush1.msra.mxu0 %v517
    %1678 = vmatprep.subr.mxu0 0.0
    %1679 = vmatpush1.msra.mxu0 %v518
    %1680 = vmatprep.subr.mxu0 0.0
    %1681 = vmatpush1.msra.mxu0 %v519
    %1682 = vmatprep.subr.mxu0 0.0
    %1683 = vmatpush1.msra.mxu0 %v520
    %1684 = vmatprep.subr.mxu0 0.0
    %1685 = vmatpush1.msra.mxu0 %v521
    %1686 = vmatprep.subr.mxu0 0.0
    %1687 = vmatpush1.msra.mxu0 %v522
    %1688 = vmatprep.subr.mxu0 0.0
    %1689 = vmatpush1.msra.mxu0 %v523
    %1690 = vmatprep.subr.mxu0 0.0
    %1691 = vmatpush1.msra.mxu0 0.0
    %1692 = vmatprep.subr.mxu0 0.0
    %1693 = vmatpush1.msra.mxu0 0.0
    %1694 = vmatprep.subr.mxu0 0.0
    %1695 = vmatpush1.msra.mxu0 0.0
    %1696 = vmatprep.subr.mxu0 0.0
    %1697 = vmatpush1.msra.mxu0 0.0
    %1698 = vmatprep.subr.mxu0 0.0
    %1699 = vmatpush1.msra.mxu0 0.0
    %1700 = vmatprep.subr.mxu0 0.0
    %1701 = vmatpush1.msra.mxu0 0.0
    %1702 = vmatprep.subr.mxu0 0.0
    %1703 = vmatpush1.msra.mxu0 0.0
    %1704 = vmatprep.subr.mxu0 0.0
    %1705 = vmatpush1.msra.mxu0 0.0
    %1706 = vmatprep.subr.mxu0 0.0
    %1707 = vmatpush1.msra.mxu0 0.0
    %1708 = vmatprep.subr.mxu0 0.0
    %1709 = vmatpush1.msra.mxu0 0.0
    %1710 = vmatprep.subr.mxu0 0.0
    %1711 = vmatpush1.msra.mxu0 0.0
    %1712 = vmatprep.subr.mxu0 0.0
    %1713 = vmatpush1.msra.mxu0 0.0
    %1714 = vmatprep.subr.mxu0 0.0
    %1715 = vmatpush1.msra.mxu0 0.0
    %1716 = vmatprep.subr.mxu0 0.0
    %1717 = vmatpush1.msra.mxu0 0.0
    %1718 = vmatprep.subr.mxu0 0.0
    %1719 = vmatpush1.msra.mxu0 0.0
    %1720 = vmatprep.subr.mxu0 0.0
    %1721 = vmatpush1.msra.mxu0 0.0
    %1722 = vmatprep.subr.mxu0 0.0
    %1723 = vmatpush1.msra.mxu0 0.0
    %1724 = vmatprep.subr.mxu0 0.0
    %1725 = vmatpush1.msra.mxu0 0.0
    %1726 = vmatprep.mubr.f32.mxu0 0.0
    %1727 = vmatmul.mubr.f32.gmra.mrb[0].mxu0 %v526
    %v1728 = vpop.f32.mrb[0].mxu0
    %v1729 = vadd.f32 %v1519, %v1728
    %v1730 = vpop.f32.mrb[0].mxu0
    %1731 = vmatprep.mubr.f32.mxu0 0.0
    %1732 = vmatmul.mubr.f32.gmra.mrb[0].mxu0 %v529
    %v1733 = vpop.f32.mrb[0].mxu0
    %v1734 = vadd.f32 %v1524, %v1733
    %v1735 = vpop.f32.mrb[0].mxu0
    %1736 = vmatprep.mubr.f32.mxu0 0.0
    %1737 = vmatmul.mubr.f32.gmra.mrb[0].mxu0 %v532
    %v1738 = vpop.f32.mrb[0].mxu0
    %v1739 = vadd.f32 %v1529, %v1738
    %v1740 = vpop.f32.mrb[0].mxu0
    %1741 = vmatprep.mubr.f32.mxu0 0.0
    %1742 = vmatmul.mubr.f32.gmra.mrb[0].mxu0 %v535
    %v1743 = vpop.f32.mrb[0].mxu0
    %v1744 = vadd.f32 %v1534, %v1743
    %v1745 = vpop.f32.mrb[0].mxu0
    %1746 = vmatprep.mubr.f32.mxu0 0.0
    %1747 = vmatmul.mubr.f32.gmra.mrb[0].mxu0 %v538
    %v1748 = vpop.f32.mrb[0].mxu0
    %v1749 = vadd.f32 %v1539, %v1748
    %v1750 = vpop.f32.mrb[0].mxu0
    %1751 = vmatprep.mubr.f32.mxu0 0.0
    %1752 = vmatmul.mubr.f32.gmra.mrb[0].mxu0 %v541
    %v1753 = vpop.f32.mrb[0].mxu0
    %v1754 = vadd.f32 %v1544, %v1753
    %v1755 = vpop.f32.mrb[0].mxu0
    %1756 = vmatprep.mubr.f32.mxu0 0.0
    %1757 = vmatmul.mubr.f32.gmra.mrb[0].mxu0 %v544
    %v1758 = vpop.f32.mrb[0].mxu0
    %v1759 = vadd.f32 %v1549, %v1758
    %v1760 = vpop.f32.mrb[0].mxu0
    %1761 = vmatprep.mubr.f32.mxu0 0.0
    %1762 = vmatmul.mubr.f32.gmra.mrb[0].mxu0 %v547
    %v1763 = vpop.f32.mrb[0].mxu0
    %v1764 = vadd.f32 %v1554, %v1763
    %v1765 = vpop.f32.mrb[0].mxu0
    %1766 = vmatprep.mubr.f32.mxu0 0.0
    %1767 = vmatmul.mubr.f32.gmra.mrb[0].mxu0 %v550
    %v1768 = vpop.f32.mrb[0].mxu0
    %v1769 = vadd.f32 %v1559, %v1768
    %v1770 = vpop.f32.mrb[0].mxu0
    %1771 = vmatprep.mubr.f32.mxu0 0.0
    %1772 = vmatmul.mubr.f32.gmra.mrb[0].mxu0 %v553
    %v1773 = vpop.f32.mrb[0].mxu0
    %v1774 = vadd.f32 %v1564, %v1773
    %v1775 = vpop.f32.mrb[0].mxu0
    %1776 = vmatprep.mubr.f32.mxu0 0.0
    %1777 = vmatmul.mubr.f32.gmra.mrb[0].mxu0 %v556
    %v1778 = vpop.f32.mrb[0].mxu0
    %v1779 = vadd.f32 %v1569, %v1778
    %v1780 = vpop.f32.mrb[0].mxu0
    %1781 = vmatprep.mubr.f32.mxu0 0.0
    %1782 = vmatmul.mubr.f32.gmra.mrb[0].mxu0 %v559
    %v1783 = vpop.f32.mrb[0].mxu0
    %v1784 = vadd.f32 %v1574, %v1783
    %v1785 = vpop.f32.mrb[0].mxu0
    %1786 = vmatprep.mubr.f32.mxu0 0.0
    %1787 = vmatmul.mubr.f32.gmra.mrb[0].mxu0 %v562
    %v1788 = vpop.f32.mrb[0].mxu0
    %v1789 = vadd.f32 %v1579, %v1788
    %v1790 = vpop.f32.mrb[0].mxu0
    %1791 = vmatprep.mubr.f32.mxu0 0.0
    %1792 = vmatmul.mubr.f32.gmra.mrb[0].mxu0 %v565
    %v1793 = vpop.f32.mrb[0].mxu0
    %v1794 = vadd.f32 %v1584, %v1793
    %v1795 = vpop.f32.mrb[0].mxu0
    %1796 = vmatprep.mubr.f32.mxu0 0.0
    %1797 = vmatmul.mubr.f32.gmra.mrb[0].mxu0 %v568
    %v1798 = vpop.f32.mrb[0].mxu0
    %v1799 = vadd.f32 %v1589, %v1798
    %v1800 = vpop.f32.mrb[0].mxu0
    %1801 = vmatprep.mubr.f32.mxu0 0.0
    %1802 = vmatmul.mubr.f32.gmra.mrb[0].mxu0 %v571
    %v1803 = vpop.f32.mrb[0].mxu0
    %v1804 = vadd.f32 %v1594, %v1803
    %v1805 = vpop.f32.mrb[0].mxu0
    %1806 = vmatprep.mubr.f32.mxu0 0.0
    %1807 = vmatmul.mubr.f32.gmra.mrb[0].mxu0 %v574
    %v1808 = vpop.f32.mrb[0].mxu0
    %v1809 = vadd.f32 %v1599, %v1808
    %v1810 = vpop.f32.mrb[0].mxu0
    %1811 = vmatprep.mubr.f32.mxu0 0.0
    %1812 = vmatmul.mubr.f32.gmra.mrb[0].mxu0 %v577
    %v1813 = vpop.f32.mrb[0].mxu0
    %v1814 = vadd.f32 %v1604, %v1813
    %v1815 = vpop.f32.mrb[0].mxu0
    %1816 = vmatprep.mubr.f32.mxu0 0.0
    %1817 = vmatmul.mubr.f32.gmra.mrb[0].mxu0 %v580
    %v1818 = vpop.f32.mrb[0].mxu0
    %v1819 = vadd.f32 %v1609, %v1818
    %v1820 = vpop.f32.mrb[0].mxu0
    %1821 = vmatprep.mubr.f32.mxu0 0.0
    %1822 = vmatmul.mubr.f32.gmra.mrb[0].mxu0 %v583
    %v1823 = vpop.f32.mrb[0].mxu0
    %v1824 = vadd.f32 %v1614, %v1823
    %v1825 = vpop.f32.mrb[0].mxu0
    %1826 = vmatprep.mubr.f32.mxu0 0.0
    %1827 = vmatmul.mubr.f32.gmra.mrb[0].mxu0 %v586
    %v1828 = vpop.f32.mrb[0].mxu0
    %v1829 = vadd.f32 %v1619, %v1828
    %v1830 = vpop.f32.mrb[0].mxu0
    %1831 = vmatprep.mubr.f32.mxu0 0.0
    %1832 = vmatmul.mubr.f32.gmra.mrb[0].mxu0 %v589
    %v1833 = vpop.f32.mrb[0].mxu0
    %v1834 = vadd.f32 %v1624, %v1833
    %v1835 = vpop.f32.mrb[0].mxu0
    %1836 = vmatprep.mubr.f32.mxu0 0.0
    %1837 = vmatmul.mubr.f32.gmra.mrb[0].mxu0 %v592
    %v1838 = vpop.f32.mrb[0].mxu0
    %v1839 = vadd.f32 %v1629, %v1838
    %v1840 = vpop.f32.mrb[0].mxu0
    %1841 = vmatprep.mubr.f32.mxu0 0.0
    %1842 = vmatmul.mubr.f32.gmra.mrb[0].mxu0 %v595
    %v1843 = vpop.f32.mrb[0].mxu0
    %v1844 = vadd.f32 %v1634, %v1843
    %v1845 = vpop.f32.mrb[0].mxu0
    %1846 = vmatprep.mubr.f32.mxu0 0.0
    %1847 = vmatmul.mubr.f32.gmra.mrb[0].mxu0 %v598
    %v1848 = vpop.f32.mrb[0].mxu0
    %v1849 = vadd.f32 %v1639, %v1848
    %v1850 = vpop.f32.mrb[0].mxu0
    %1851 = vmatprep.mubr.f32.mxu0 0.0
    %1852 = vmatmul.mubr.f32.gmra.mrb[0].mxu0 %v601
    %v1853 = vpop.f32.mrb[0].mxu0
    %v1854 = vadd.f32 %v1644, %v1853
    %v1855 = vpop.f32.mrb[0].mxu0
    %1856 = vmatprep.mubr.f32.mxu0 0.0
    %1857 = vmatmul.mubr.f32.gmra.mrb[0].mxu0 %v604
    %v1858 = vpop.f32.mrb[0].mxu0
    %v1859 = vadd.f32 %v1649, %v1858
    %v1860 = vpop.f32.mrb[0].mxu0
    %1861 = vmatprep.mubr.f32.mxu0 0.0
    %1862 = vmatmul.mubr.f32.gmra.mrb[0].mxu0 %v607
    %v1863 = vpop.f32.mrb[0].mxu0
    %v1864 = vadd.f32 %v1654, %v1863
    %v1865 = vpop.f32.mrb[0].mxu0
    %1866 = vmatprep.mubr.f32.mxu0 0.0
    %1867 = vmatmul.mubr.f32.gmra.mrb[0].mxu0 %v610
    %v1868 = vpop.f32.mrb[0].mxu0
    %v1869 = vadd.f32 %v1659, %v1868
    %v1870 = vpop.f32.mrb[0].mxu0
    %1871 = vdwg.mxu0
    %vm1872 = vcmask 400384
    %1873 = vst.msk [vmem:[%s4] sm:$0xff] %vm1872, %v1729
    %1874 = vst.msk [vmem:[%s4 + $0x8] sm:$0xff] %vm1872, %v1734
    %1875 = vst.msk [vmem:[%s4 + $0x10] sm:$0xff] %vm1872, %v1739
    %1876 = vst.msk [vmem:[%s4 + $0x18] sm:$0xff] %vm1872, %v1744
    %1877 = vst.msk [vmem:[%s4 + $0x20] sm:$0xff] %vm1872, %v1749
    %1878 = vst.msk [vmem:[%s4 + $0x28] sm:$0xff] %vm1872, %v1754
    %1879 = vst.msk [vmem:[%s4 + $0x30] sm:$0xff] %vm1872, %v1759
    %1880 = vst.msk [vmem:[%s4 + $0x38] sm:$0xff] %vm1872, %v1764
    %1881 = vst.msk [vmem:[%s4 + $0x40] sm:$0xff] %vm1872, %v1769
    %1882 = vst.msk [vmem:[%s4 + $0x48] sm:$0xff] %vm1872, %v1774
    %1883 = vst.msk [vmem:[%s4 + $0x50] sm:$0xff] %vm1872, %v1779
    %1884 = vst.msk [vmem:[%s4 + $0x58] sm:$0xff] %vm1872, %v1784
    %1885 = vst.msk [vmem:[%s4 + $0x60] sm:$0xff] %vm1872, %v1789
    %1886 = vst.msk [vmem:[%s4 + $0x68] sm:$0xff] %vm1872, %v1794
    %1887 = vst.msk [vmem:[%s4 + $0x70] sm:$0xff] %vm1872, %v1799
    %1888 = vst.msk [vmem:[%s4 + $0x78] sm:$0xff] %vm1872, %v1804
    %1889 = vst.msk [vmem:[%s4 + $0x80] sm:$0xff] %vm1872, %v1809
    %1890 = vst.msk [vmem:[%s4 + $0x88] sm:$0xff] %vm1872, %v1814
    %1891 = vst.msk [vmem:[%s4 + $0x90] sm:$0xff] %vm1872, %v1819
    %1892 = vst.msk [vmem:[%s4 + $0x98] sm:$0xff] %vm1872, %v1824
    %1893 = vst.msk [vmem:[%s4 + $0xa0] sm:$0xff] %vm1872, %v1829
    %1894 = vst.msk [vmem:[%s4 + $0xa8] sm:$0xff] %vm1872, %v1834
    %1895 = vst.msk [vmem:[%s4 + $0xb0] sm:$0xff] %vm1872, %v1839
    %1896 = vst.msk [vmem:[%s4 + $0xb8] sm:$0xff] %vm1872, %v1844
    %1897 = vst.msk [vmem:[%s4 + $0xc0] sm:$0xff] %vm1872, %v1849
    %1898 = vst.msk [vmem:[%s4 + $0xc8] sm:$0xff] %vm1872, %v1854
    %1899 = vst.msk [vmem:[%s4 + $0xd0] sm:$0xff] %vm1872, %v1859
    %1900 = vst.msk [vmem:[%s4 + $0xd8] sm:$0xff] %vm1872, %v1864
    %1901 = vst.msk [vmem:[%s4 + $0xe0] sm:$0xff] %vm1872, %v1869
    %v1902 = vsel %vm1872, %v1729, 0.0
    %1903 = vadd.xlane.f32.xlu0 %v1902
    %v1904 = vpop.xlane.xlu0 %1903
    %v1905 = vsel %vm1872, %v1734, 0.0
    %1906 = vadd.xlane.f32.xlu0 %v1905
    %v1907 = vpop.xlane.xlu0 %1906
    %v1908 = vsel %vm1872, %v1739, 0.0
    %1909 = vadd.xlane.f32.xlu0 %v1908
    %v1910 = vpop.xlane.xlu0 %1909
    %v1911 = vsel %vm1872, %v1744, 0.0
    %1912 = vadd.xlane.f32.xlu0 %v1911
    %v1913 = vpop.xlane.xlu0 %1912
    %v1914 = vsel %vm1872, %v1749, 0.0
    %1915 = vadd.xlane.f32.xlu0 %v1914
    %v1916 = vpop.xlane.xlu0 %1915
    %v1917 = vsel %vm1872, %v1754, 0.0
    %1918 = vadd.xlane.f32.xlu0 %v1917
    %v1919 = vpop.xlane.xlu0 %1918
    %v1920 = vsel %vm1872, %v1759, 0.0
    %1921 = vadd.xlane.f32.xlu0 %v1920
    %v1922 = vpop.xlane.xlu0 %1921
    %v1923 = vsel %vm1872, %v1764, 0.0
    %1924 = vadd.xlane.f32.xlu0 %v1923
    %v1925 = vpop.xlane.xlu0 %1924
    %v1926 = vsel %vm1872, %v1769, 0.0
    %1927 = vadd.xlane.f32.xlu0 %v1926
    %v1928 = vpop.xlane.xlu0 %1927
    %v1929 = vsel %vm1872, %v1774, 0.0
    %1930 = vadd.xlane.f32.xlu0 %v1929
    %v1931 = vpop.xlane.xlu0 %1930
    %v1932 = vsel %vm1872, %v1779, 0.0
    %1933 = vadd.xlane.f32.xlu0 %v1932
    %v1934 = vpop.xlane.xlu0 %1933
    %v1935 = vsel %vm1872, %v1784, 0.0
    %1936 = vadd.xlane.f32.xlu0 %v1935
    %v1937 = vpop.xlane.xlu0 %1936
    %v1938 = vsel %vm1872, %v1789, 0.0
    %1939 = vadd.xlane.f32.xlu0 %v1938
    %v1940 = vpop.xlane.xlu0 %1939
    %v1941 = vsel %vm1872, %v1794, 0.0
    %1942 = vadd.xlane.f32.xlu0 %v1941
    %v1943 = vpop.xlane.xlu0 %1942
    %v1944 = vsel %vm1872, %v1799, 0.0
    %1945 = vadd.xlane.f32.xlu0 %v1944
    %v1946 = vpop.xlane.xlu0 %1945
    %v1947 = vsel %vm1872, %v1804, 0.0
    %1948 = vadd.xlane.f32.xlu0 %v1947
    %v1949 = vpop.xlane.xlu0 %1948
    %v1950 = vsel %vm1872, %v1809, 0.0
    %1951 = vadd.xlane.f32.xlu0 %v1950
    %v1952 = vpop.xlane.xlu0 %1951
    %v1953 = vsel %vm1872, %v1814, 0.0
    %1954 = vadd.xlane.f32.xlu0 %v1953
    %v1955 = vpop.xlane.xlu0 %1954
    %v1956 = vsel %vm1872, %v1819, 0.0
    %1957 = vadd.xlane.f32.xlu0 %v1956
    %v1958 = vpop.xlane.xlu0 %1957
    %v1959 = vsel %vm1872, %v1824, 0.0
    %1960 = vadd.xlane.f32.xlu0 %v1959
    %v1961 = vpop.xlane.xlu0 %1960
    %v1962 = vsel %vm1872, %v1829, 0.0
    %1963 = vadd.xlane.f32.xlu0 %v1962
    %v1964 = vpop.xlane.xlu0 %1963
    %v1965 = vsel %vm1872, %v1834, 0.0
    %1966 = vadd.xlane.f32.xlu0 %v1965
    %v1967 = vpop.xlane.xlu0 %1966
    %v1968 = vsel %vm1872, %v1839, 0.0
    %1969 = vadd.xlane.f32.xlu0 %v1968
    %v1970 = vpop.xlane.xlu0 %1969
    %v1971 = vsel %vm1872, %v1844, 0.0
    %1972 = vadd.xlane.f32.xlu0 %v1971
    %v1973 = vpop.xlane.xlu0 %1972
    %v1974 = vsel %vm1872, %v1849, 0.0
    %1975 = vadd.xlane.f32.xlu0 %v1974
    %v1976 = vpop.xlane.xlu0 %1975
    %v1977 = vsel %vm1872, %v1854, 0.0
    %1978 = vadd.xlane.f32.xlu0 %v1977
    %v1979 = vpop.xlane.xlu0 %1978
    %v1980 = vsel %vm1872, %v1859, 0.0
    %1981 = vadd.xlane.f32.xlu0 %v1980
    %v1982 = vpop.xlane.xlu0 %1981
    %v1983 = vsel %vm1872, %v1864, 0.0
    %1984 = vadd.xlane.f32.xlu0 %v1983
    %v1985 = vpop.xlane.xlu0 %1984
    %v1986 = vsel %vm1872, %v1869, 0.0
    %1987 = vadd.xlane.f32.xlu0 %v1986
    %v1988 = vpop.xlane.xlu0 %1987
    %v1989 = vadd.f32 %v1904, 0.0
    %v1990 = vadd.f32 %v1907, 0.0
    %v1991 = vadd.f32 %v1910, 0.0
    %v1992 = vadd.f32 %v1913, 0.0
    %v1993 = vadd.f32 %v1916, 0.0
    %v1994 = vadd.f32 %v1919, 0.0
    %v1995 = vadd.f32 %v1922, 0.0
    %v1996 = vadd.f32 %v1925, 0.0
    %v1997 = vadd.f32 %v1928, 0.0
    %v1998 = vadd.f32 %v1931, 0.0
    %v1999 = vadd.f32 %v1934, 0.0
    %v2000 = vadd.f32 %v1937, 0.0
    %v2001 = vadd.f32 %v1940, 0.0
    %v2002 = vadd.f32 %v1943, 0.0
    %v2003 = vadd.f32 %v1946, 0.0
    %v2004 = vadd.f32 %v1949, 0.0
    %v2005 = vadd.f32 %v1952, 0.0
    %v2006 = vadd.f32 %v1955, 0.0
    %v2007 = vadd.f32 %v1958, 0.0
    %v2008 = vadd.f32 %v1961, 0.0
    %v2009 = vadd.f32 %v1964, 0.0
    %v2010 = vadd.f32 %v1967, 0.0
    %v2011 = vadd.f32 %v1970, 0.0
    %v2012 = vadd.f32 %v1973, 0.0
    %v2013 = vadd.f32 %v1976, 0.0
    %v2014 = vadd.f32 %v1979, 0.0
    %v2015 = vadd.f32 %v1982, 0.0
    %v2016 = vadd.f32 %v1985, 0.0
    %v2017 = vadd.f32 %v1988, 0.0
    %v2018 = vmul.f32 %v1989, 0.020408163
    %v2019 = vmul.f32 %v1990, 0.020408163
    %v2020 = vmul.f32 %v1991, 0.020408163
    %v2021 = vmul.f32 %v1992, 0.020408163
    %v2022 = vmul.f32 %v1993, 0.020408163
    %v2023 = vmul.f32 %v1994, 0.020408163
    %v2024 = vmul.f32 %v1995, 0.020408163
    %v2025 = vmul.f32 %v1996, 0.020408163
    %v2026 = vmul.f32 %v1997, 0.020408163
    %v2027 = vmul.f32 %v1998, 0.020408163
    %v2028 = vmul.f32 %v1999, 0.020408163
    %v2029 = vmul.f32 %v2000, 0.020408163
    %v2030 = vmul.f32 %v2001, 0.020408163
    %v2031 = vmul.f32 %v2002, 0.020408163
    %v2032 = vmul.f32 %v2003, 0.020408163
    %v2033 = vmul.f32 %v2004, 0.020408163
    %v2034 = vmul.f32 %v2005, 0.020408163
    %v2035 = vmul.f32 %v2006, 0.020408163
    %v2036 = vmul.f32 %v2007, 0.020408163
    %v2037 = vmul.f32 %v2008, 0.020408163
    %v2038 = vmul.f32 %v2009, 0.020408163
    %v2039 = vmul.f32 %v2010, 0.020408163
    %v2040 = vmul.f32 %v2011, 0.020408163
    %v2041 = vmul.f32 %v2012, 0.020408163
    %v2042 = vmul.f32 %v2013, 0.020408163
    %v2043 = vmul.f32 %v2014, 0.020408163
    %v2044 = vmul.f32 %v2015, 0.020408163
    %v2045 = vmul.f32 %v2016, 0.020408163
    %v2046 = vmul.f32 %v2017, 0.020408163
    %v2047 = vld [vmem:[%s4] sm:$0xff]
    %v2048 = vld [vmem:[%s4 + $0x8] sm:$0xff]
    %v2049 = vld [vmem:[%s4 + $0x10] sm:$0xff]
    %v2050 = vld [vmem:[%s4 + $0x18] sm:$0xff]
    %v2051 = vld [vmem:[%s4 + $0x20] sm:$0xff]
    %v2052 = vld [vmem:[%s4 + $0x28] sm:$0xff]
    %v2053 = vld [vmem:[%s4 + $0x30] sm:$0xff]
    %v2054 = vld [vmem:[%s4 + $0x38] sm:$0xff]
    %v2055 = vld [vmem:[%s4 + $0x40] sm:$0xff]
    %v2056 = vld [vmem:[%s4 + $0x48] sm:$0xff]
    %v2057 = vld [vmem:[%s4 + $0x50] sm:$0xff]
    %v2058 = vld [vmem:[%s4 + $0x58] sm:$0xff]
    %v2059 = vld [vmem:[%s4 + $0x60] sm:$0xff]
    %v2060 = vld [vmem:[%s4 + $0x68] sm:$0xff]
    %v2061 = vld [vmem:[%s4 + $0x70] sm:$0xff]
    %v2062 = vld [vmem:[%s4 + $0x78] sm:$0xff]
    %v2063 = vld [vmem:[%s4 + $0x80] sm:$0xff]
    %v2064 = vld [vmem:[%s4 + $0x88] sm:$0xff]
    %v2065 = vld [vmem:[%s4 + $0x90] sm:$0xff]
    %v2066 = vld [vmem:[%s4 + $0x98] sm:$0xff]
    %v2067 = vld [vmem:[%s4 + $0xa0] sm:$0xff]
    %v2068 = vld [vmem:[%s4 + $0xa8] sm:$0xff]
    %v2069 = vld [vmem:[%s4 + $0xb0] sm:$0xff]
    %v2070 = vld [vmem:[%s4 + $0xb8] sm:$0xff]
    %v2071 = vld [vmem:[%s4 + $0xc0] sm:$0xff]
    %v2072 = vld [vmem:[%s4 + $0xc8] sm:$0xff]
    %v2073 = vld [vmem:[%s4 + $0xd0] sm:$0xff]
    %v2074 = vld [vmem:[%s4 + $0xd8] sm:$0xff]
    %v2075 = vld [vmem:[%s4 + $0xe0] sm:$0xff]
    %v2076 = vsub.f32 %v2047, %v2018
    %v2077 = vsub.f32 %v2048, %v2019
    %v2078 = vsub.f32 %v2049, %v2020
    %v2079 = vsub.f32 %v2050, %v2021
    %v2080 = vsub.f32 %v2051, %v2022
    %v2081 = vsub.f32 %v2052, %v2023
    %v2082 = vsub.f32 %v2053, %v2024
    %v2083 = vsub.f32 %v2054, %v2025
    %v2084 = vsub.f32 %v2055, %v2026
    %v2085 = vsub.f32 %v2056, %v2027
    %v2086 = vsub.f32 %v2057, %v2028
    %v2087 = vsub.f32 %v2058, %v2029
    %v2088 = vsub.f32 %v2059, %v2030
    %v2089 = vsub.f32 %v2060, %v2031
    %v2090 = vsub.f32 %v2061, %v2032
    %v2091 = vsub.f32 %v2062, %v2033
    %v2092 = vsub.f32 %v2063, %v2034
    %v2093 = vsub.f32 %v2064, %v2035
    %v2094 = vsub.f32 %v2065, %v2036
    %v2095 = vsub.f32 %v2066, %v2037
    %v2096 = vsub.f32 %v2067, %v2038
    %v2097 = vsub.f32 %v2068, %v2039
    %v2098 = vsub.f32 %v2069, %v2040
    %v2099 = vsub.f32 %v2070, %v2041
    %v2100 = vsub.f32 %v2071, %v2042
    %v2101 = vsub.f32 %v2072, %v2043
    %v2102 = vsub.f32 %v2073, %v2044
    %v2103 = vsub.f32 %v2074, %v2045
    %v2104 = vsub.f32 %v2075, %v2046
    %v2105 = vmul.f32 %v2076, %v2076
    %v2106 = vmul.f32 %v2077, %v2077
    %v2107 = vmul.f32 %v2078, %v2078
    %v2108 = vmul.f32 %v2079, %v2079
    %v2109 = vmul.f32 %v2080, %v2080
    %v2110 = vmul.f32 %v2081, %v2081
    %v2111 = vmul.f32 %v2082, %v2082
    %v2112 = vmul.f32 %v2083, %v2083
    %v2113 = vmul.f32 %v2084, %v2084
    %v2114 = vmul.f32 %v2085, %v2085
    %v2115 = vmul.f32 %v2086, %v2086
    %v2116 = vmul.f32 %v2087, %v2087
    %v2117 = vmul.f32 %v2088, %v2088
    %v2118 = vmul.f32 %v2089, %v2089
    %v2119 = vmul.f32 %v2090, %v2090
    %v2120 = vmul.f32 %v2091, %v2091
    %v2121 = vmul.f32 %v2092, %v2092
    %v2122 = vmul.f32 %v2093, %v2093
    %v2123 = vmul.f32 %v2094, %v2094
    %v2124 = vmul.f32 %v2095, %v2095
    %v2125 = vmul.f32 %v2096, %v2096
    %v2126 = vmul.f32 %v2097, %v2097
    %v2127 = vmul.f32 %v2098, %v2098
    %v2128 = vmul.f32 %v2099, %v2099
    %v2129 = vmul.f32 %v2100, %v2100
    %v2130 = vmul.f32 %v2101, %v2101
    %v2131 = vmul.f32 %v2102, %v2102
    %v2132 = vmul.f32 %v2103, %v2103
    %v2133 = vmul.f32 %v2104, %v2104
    %v2134 = vsel %vm1872, %v2105, 0.0
    %2135 = vadd.xlane.f32.xlu0 %v2134
    %v2136 = vpop.xlane.xlu0 %2135
    %v2137 = vsel %vm1872, %v2106, 0.0
    %2138 = vadd.xlane.f32.xlu0 %v2137
    %v2139 = vpop.xlane.xlu0 %2138
    %v2140 = vsel %vm1872, %v2107, 0.0
    %2141 = vadd.xlane.f32.xlu0 %v2140
    %v2142 = vpop.xlane.xlu0 %2141
    %v2143 = vsel %vm1872, %v2108, 0.0
    %2144 = vadd.xlane.f32.xlu0 %v2143
    %v2145 = vpop.xlane.xlu0 %2144
    %v2146 = vsel %vm1872, %v2109, 0.0
    %2147 = vadd.xlane.f32.xlu0 %v2146
    %v2148 = vpop.xlane.xlu0 %2147
    %v2149 = vsel %vm1872, %v2110, 0.0
    %2150 = vadd.xlane.f32.xlu0 %v2149
    %v2151 = vpop.xlane.xlu0 %2150
    %v2152 = vsel %vm1872, %v2111, 0.0
    %2153 = vadd.xlane.f32.xlu0 %v2152
    %v2154 = vpop.xlane.xlu0 %2153
    %v2155 = vsel %vm1872, %v2112, 0.0
    %2156 = vadd.xlane.f32.xlu0 %v2155
    %v2157 = vpop.xlane.xlu0 %2156
    %v2158 = vsel %vm1872, %v2113, 0.0
    %2159 = vadd.xlane.f32.xlu0 %v2158
    %v2160 = vpop.xlane.xlu0 %2159
    %v2161 = vsel %vm1872, %v2114, 0.0
    %2162 = vadd.xlane.f32.xlu0 %v2161
    %v2163 = vpop.xlane.xlu0 %2162
    %v2164 = vsel %vm1872, %v2115, 0.0
    %2165 = vadd.xlane.f32.xlu0 %v2164
    %v2166 = vpop.xlane.xlu0 %2165
    %v2167 = vsel %vm1872, %v2116, 0.0
    %2168 = vadd.xlane.f32.xlu0 %v2167
    %v2169 = vpop.xlane.xlu0 %2168
    %v2170 = vsel %vm1872, %v2117, 0.0
    %2171 = vadd.xlane.f32.xlu0 %v2170
    %v2172 = vpop.xlane.xlu0 %2171
    %v2173 = vsel %vm1872, %v2118, 0.0
    %2174 = vadd.xlane.f32.xlu0 %v2173
    %v2175 = vpop.xlane.xlu0 %2174
    %v2176 = vsel %vm1872, %v2119, 0.0
    %2177 = vadd.xlane.f32.xlu0 %v2176
    %v2178 = vpop.xlane.xlu0 %2177
    %v2179 = vsel %vm1872, %v2120, 0.0
    %2180 = vadd.xlane.f32.xlu0 %v2179
    %v2181 = vpop.xlane.xlu0 %2180
    %v2182 = vsel %vm1872, %v2121, 0.0
    %2183 = vadd.xlane.f32.xlu0 %v2182
    %v2184 = vpop.xlane.xlu0 %2183
    %v2185 = vsel %vm1872, %v2122, 0.0
    %2186 = vadd.xlane.f32.xlu0 %v2185
    %v2187 = vpop.xlane.xlu0 %2186
    %v2188 = vsel %vm1872, %v2123, 0.0
    %2189 = vadd.xlane.f32.xlu0 %v2188
    %v2190 = vpop.xlane.xlu0 %2189
    %v2191 = vsel %vm1872, %v2124, 0.0
    %2192 = vadd.xlane.f32.xlu0 %v2191
    %v2193 = vpop.xlane.xlu0 %2192
    %v2194 = vsel %vm1872, %v2125, 0.0
    %2195 = vadd.xlane.f32.xlu0 %v2194
    %v2196 = vpop.xlane.xlu0 %2195
    %v2197 = vsel %vm1872, %v2126, 0.0
    %2198 = vadd.xlane.f32.xlu0 %v2197
    %v2199 = vpop.xlane.xlu0 %2198
    %v2200 = vsel %vm1872, %v2127, 0.0
    %2201 = vadd.xlane.f32.xlu0 %v2200
    %v2202 = vpop.xlane.xlu0 %2201
    %v2203 = vsel %vm1872, %v2128, 0.0
    %2204 = vadd.xlane.f32.xlu0 %v2203
    %v2205 = vpop.xlane.xlu0 %2204
    %v2206 = vsel %vm1872, %v2129, 0.0
    %2207 = vadd.xlane.f32.xlu0 %v2206
    %v2208 = vpop.xlane.xlu0 %2207
    %v2209 = vsel %vm1872, %v2130, 0.0
    %2210 = vadd.xlane.f32.xlu0 %v2209
    %v2211 = vpop.xlane.xlu0 %2210
    %v2212 = vsel %vm1872, %v2131, 0.0
    %2213 = vadd.xlane.f32.xlu0 %v2212
    %v2214 = vpop.xlane.xlu0 %2213
    %v2215 = vsel %vm1872, %v2132, 0.0
    %2216 = vadd.xlane.f32.xlu0 %v2215
    %v2217 = vpop.xlane.xlu0 %2216
    %v2218 = vsel %vm1872, %v2133, 0.0
    %2219 = vadd.xlane.f32.xlu0 %v2218
    %v2220 = vpop.xlane.xlu0 %2219
    %v2221 = vadd.f32 %v2136, 0.0
    %v2222 = vadd.f32 %v2139, 0.0
    %v2223 = vadd.f32 %v2142, 0.0
    %v2224 = vadd.f32 %v2145, 0.0
    %v2225 = vadd.f32 %v2148, 0.0
    %v2226 = vadd.f32 %v2151, 0.0
    %v2227 = vadd.f32 %v2154, 0.0
    %v2228 = vadd.f32 %v2157, 0.0
    %v2229 = vadd.f32 %v2160, 0.0
    %v2230 = vadd.f32 %v2163, 0.0
    %v2231 = vadd.f32 %v2166, 0.0
    %v2232 = vadd.f32 %v2169, 0.0
    %v2233 = vadd.f32 %v2172, 0.0
    %v2234 = vadd.f32 %v2175, 0.0
    %v2235 = vadd.f32 %v2178, 0.0
    %v2236 = vadd.f32 %v2181, 0.0
    %v2237 = vadd.f32 %v2184, 0.0
    %v2238 = vadd.f32 %v2187, 0.0
    %v2239 = vadd.f32 %v2190, 0.0
    %v2240 = vadd.f32 %v2193, 0.0
    %v2241 = vadd.f32 %v2196, 0.0
    %v2242 = vadd.f32 %v2199, 0.0
    %v2243 = vadd.f32 %v2202, 0.0
    %v2244 = vadd.f32 %v2205, 0.0
    %v2245 = vadd.f32 %v2208, 0.0
    %v2246 = vadd.f32 %v2211, 0.0
    %v2247 = vadd.f32 %v2214, 0.0
    %v2248 = vadd.f32 %v2217, 0.0
    %v2249 = vadd.f32 %v2220, 0.0
    %v2250 = vmul.f32 %v2221, 0.020408163
    %v2251 = vmul.f32 %v2222, 0.020408163
    %v2252 = vmul.f32 %v2223, 0.020408163
    %v2253 = vmul.f32 %v2224, 0.020408163
    %v2254 = vmul.f32 %v2225, 0.020408163
    %v2255 = vmul.f32 %v2226, 0.020408163
    %v2256 = vmul.f32 %v2227, 0.020408163
    %v2257 = vmul.f32 %v2228, 0.020408163
    %v2258 = vmul.f32 %v2229, 0.020408163
    %v2259 = vmul.f32 %v2230, 0.020408163
    %v2260 = vmul.f32 %v2231, 0.020408163
    %v2261 = vmul.f32 %v2232, 0.020408163
    %v2262 = vmul.f32 %v2233, 0.020408163
    %v2263 = vmul.f32 %v2234, 0.020408163
    %v2264 = vmul.f32 %v2235, 0.020408163
    %v2265 = vmul.f32 %v2236, 0.020408163
    %v2266 = vmul.f32 %v2237, 0.020408163
    %v2267 = vmul.f32 %v2238, 0.020408163
    %v2268 = vmul.f32 %v2239, 0.020408163
    %v2269 = vmul.f32 %v2240, 0.020408163
    %v2270 = vmul.f32 %v2241, 0.020408163
    %v2271 = vmul.f32 %v2242, 0.020408163
    %v2272 = vmul.f32 %v2243, 0.020408163
    %v2273 = vmul.f32 %v2244, 0.020408163
    %v2274 = vmul.f32 %v2245, 0.020408163
    %v2275 = vmul.f32 %v2246, 0.020408163
    %v2276 = vmul.f32 %v2247, 0.020408163
    %v2277 = vmul.f32 %v2248, 0.020408163
    %v2278 = vmul.f32 %v2249, 0.020408163
    %v2279 = vadd.f32 %v2250, 1e-05
    %v2280 = vadd.f32 %v2251, 1e-05
    %v2281 = vadd.f32 %v2252, 1e-05
    %v2282 = vadd.f32 %v2253, 1e-05
    %v2283 = vadd.f32 %v2254, 1e-05
    %v2284 = vadd.f32 %v2255, 1e-05
    %v2285 = vadd.f32 %v2256, 1e-05
    %v2286 = vadd.f32 %v2257, 1e-05
    %v2287 = vadd.f32 %v2258, 1e-05
    %v2288 = vadd.f32 %v2259, 1e-05
    %v2289 = vadd.f32 %v2260, 1e-05
    %v2290 = vadd.f32 %v2261, 1e-05
    %v2291 = vadd.f32 %v2262, 1e-05
    %v2292 = vadd.f32 %v2263, 1e-05
    %v2293 = vadd.f32 %v2264, 1e-05
    %v2294 = vadd.f32 %v2265, 1e-05
    %v2295 = vadd.f32 %v2266, 1e-05
    %v2296 = vadd.f32 %v2267, 1e-05
    %v2297 = vadd.f32 %v2268, 1e-05
    %v2298 = vadd.f32 %v2269, 1e-05
    %v2299 = vadd.f32 %v2270, 1e-05
    %v2300 = vadd.f32 %v2271, 1e-05
    %v2301 = vadd.f32 %v2272, 1e-05
    %v2302 = vadd.f32 %v2273, 1e-05
    %v2303 = vadd.f32 %v2274, 1e-05
    %v2304 = vadd.f32 %v2275, 1e-05
    %v2305 = vadd.f32 %v2276, 1e-05
    %v2306 = vadd.f32 %v2277, 1e-05
    %v2307 = vadd.f32 %v2278, 1e-05
    %v2308 = vrsqrt.pop %v2279
    %v2309 = vrsqrt.pop %v2280
    %v2310 = vrsqrt.pop %v2281
    %v2311 = vrsqrt.pop %v2282
    %v2312 = vrsqrt.pop %v2283
    %v2313 = vrsqrt.pop %v2284
    %v2314 = vrsqrt.pop %v2285
    %v2315 = vrsqrt.pop %v2286
    %v2316 = vrsqrt.pop %v2287
    %v2317 = vrsqrt.pop %v2288
    %v2318 = vrsqrt.pop %v2289
    %v2319 = vrsqrt.pop %v2290
    %v2320 = vrsqrt.pop %v2291
    %v2321 = vrsqrt.pop %v2292
    %v2322 = vrsqrt.pop %v2293
    %v2323 = vrsqrt.pop %v2294
    %v2324 = vrsqrt.pop %v2295
    %v2325 = vrsqrt.pop %v2296
    %v2326 = vrsqrt.pop %v2297
    %v2327 = vrsqrt.pop %v2298
    %v2328 = vrsqrt.pop %v2299
    %v2329 = vrsqrt.pop %v2300
    %v2330 = vrsqrt.pop %v2301
    %v2331 = vrsqrt.pop %v2302
    %v2332 = vrsqrt.pop %v2303
    %v2333 = vrsqrt.pop %v2304
    %v2334 = vrsqrt.pop %v2305
    %v2335 = vrsqrt.pop %v2306
    %v2336 = vrsqrt.pop %v2307
    %v2337 = vld [vmem:[%s2] sm:$0xff]
    %v2338 = vld [vmem:[%s2 + $0x8] sm:$0xff]
    %v2339 = vld [vmem:[%s2 + $0x10] sm:$0xff]
    %v2340 = vld [vmem:[%s2 + $0x18] sm:$0xff]
    %v2341 = vld [vmem:[%s2 + $0x20] sm:$0xff]
    %v2342 = vld [vmem:[%s2 + $0x28] sm:$0xff]
    %v2343 = vld [vmem:[%s2 + $0x30] sm:$0xff]
    %v2344 = vld [vmem:[%s2 + $0x38] sm:$0xff]
    %v2345 = vld [vmem:[%s2 + $0x40] sm:$0xff]
    %v2346 = vld [vmem:[%s2 + $0x48] sm:$0xff]
    %v2347 = vld [vmem:[%s2 + $0x50] sm:$0xff]
    %v2348 = vld [vmem:[%s2 + $0x58] sm:$0xff]
    %v2349 = vld [vmem:[%s2 + $0x60] sm:$0xff]
    %v2350 = vld [vmem:[%s2 + $0x68] sm:$0xff]
    %v2351 = vld [vmem:[%s2 + $0x70] sm:$0xff]
    %v2352 = vld [vmem:[%s2 + $0x78] sm:$0xff]
    %v2353 = vld [vmem:[%s2 + $0x80] sm:$0xff]
    %v2354 = vld [vmem:[%s2 + $0x88] sm:$0xff]
    %v2355 = vld [vmem:[%s2 + $0x90] sm:$0xff]
    %v2356 = vld [vmem:[%s2 + $0x98] sm:$0xff]
    %v2357 = vld [vmem:[%s2 + $0xa0] sm:$0xff]
    %v2358 = vld [vmem:[%s2 + $0xa8] sm:$0xff]
    %v2359 = vld [vmem:[%s2 + $0xb0] sm:$0xff]
    %v2360 = vld [vmem:[%s2 + $0xb8] sm:$0xff]
    %v2361 = vld [vmem:[%s2 + $0xc0] sm:$0xff]
    %v2362 = vld [vmem:[%s2 + $0xc8] sm:$0xff]
    %v2363 = vld [vmem:[%s2 + $0xd0] sm:$0xff]
    %v2364 = vld [vmem:[%s2 + $0xd8] sm:$0xff]
    %v2365 = vld [vmem:[%s2 + $0xe0] sm:$0xff]
    %v2366 = vmul.f32 %v2337, %v2308
    %v2367 = vmul.f32 %v2338, %v2309
    %v2368 = vmul.f32 %v2339, %v2310
    %v2369 = vmul.f32 %v2340, %v2311
    %v2370 = vmul.f32 %v2341, %v2312
    %v2371 = vmul.f32 %v2342, %v2313
    %v2372 = vmul.f32 %v2343, %v2314
    %v2373 = vmul.f32 %v2344, %v2315
    %v2374 = vmul.f32 %v2345, %v2316
    %v2375 = vmul.f32 %v2346, %v2317
    %v2376 = vmul.f32 %v2347, %v2318
    %v2377 = vmul.f32 %v2348, %v2319
    %v2378 = vmul.f32 %v2349, %v2320
    %v2379 = vmul.f32 %v2350, %v2321
    %v2380 = vmul.f32 %v2351, %v2322
    %v2381 = vmul.f32 %v2352, %v2323
    %v2382 = vmul.f32 %v2353, %v2324
    %v2383 = vmul.f32 %v2354, %v2325
    %v2384 = vmul.f32 %v2355, %v2326
    %v2385 = vmul.f32 %v2356, %v2327
    %v2386 = vmul.f32 %v2357, %v2328
    %v2387 = vmul.f32 %v2358, %v2329
    %v2388 = vmul.f32 %v2359, %v2330
    %v2389 = vmul.f32 %v2360, %v2331
    %v2390 = vmul.f32 %v2361, %v2332
    %v2391 = vmul.f32 %v2362, %v2333
    %v2392 = vmul.f32 %v2363, %v2334
    %v2393 = vmul.f32 %v2364, %v2335
    %v2394 = vmul.f32 %v2365, %v2336
    %v2395 = vld [vmem:[%s3] sm:$0xff]
    %v2396 = vld [vmem:[%s3 + $0x8] sm:$0xff]
    %v2397 = vld [vmem:[%s3 + $0x10] sm:$0xff]
    %v2398 = vld [vmem:[%s3 + $0x18] sm:$0xff]
    %v2399 = vld [vmem:[%s3 + $0x20] sm:$0xff]
    %v2400 = vld [vmem:[%s3 + $0x28] sm:$0xff]
    %v2401 = vld [vmem:[%s3 + $0x30] sm:$0xff]
    %v2402 = vld [vmem:[%s3 + $0x38] sm:$0xff]
    %v2403 = vld [vmem:[%s3 + $0x40] sm:$0xff]
    %v2404 = vld [vmem:[%s3 + $0x48] sm:$0xff]
    %v2405 = vld [vmem:[%s3 + $0x50] sm:$0xff]
    %v2406 = vld [vmem:[%s3 + $0x58] sm:$0xff]
    %v2407 = vld [vmem:[%s3 + $0x60] sm:$0xff]
    %v2408 = vld [vmem:[%s3 + $0x68] sm:$0xff]
    %v2409 = vld [vmem:[%s3 + $0x70] sm:$0xff]
    %v2410 = vld [vmem:[%s3 + $0x78] sm:$0xff]
    %v2411 = vld [vmem:[%s3 + $0x80] sm:$0xff]
    %v2412 = vld [vmem:[%s3 + $0x88] sm:$0xff]
    %v2413 = vld [vmem:[%s3 + $0x90] sm:$0xff]
    %v2414 = vld [vmem:[%s3 + $0x98] sm:$0xff]
    %v2415 = vld [vmem:[%s3 + $0xa0] sm:$0xff]
    %v2416 = vld [vmem:[%s3 + $0xa8] sm:$0xff]
    %v2417 = vld [vmem:[%s3 + $0xb0] sm:$0xff]
    %v2418 = vld [vmem:[%s3 + $0xb8] sm:$0xff]
    %v2419 = vld [vmem:[%s3 + $0xc0] sm:$0xff]
    %v2420 = vld [vmem:[%s3 + $0xc8] sm:$0xff]
    %v2421 = vld [vmem:[%s3 + $0xd0] sm:$0xff]
    %v2422 = vld [vmem:[%s3 + $0xd8] sm:$0xff]
    %v2423 = vld [vmem:[%s3 + $0xe0] sm:$0xff]
    %v2424 = vmul.f32 %v2018, %v2366
    %v2425 = vmul.f32 %v2019, %v2367
    %v2426 = vmul.f32 %v2020, %v2368
    %v2427 = vmul.f32 %v2021, %v2369
    %v2428 = vmul.f32 %v2022, %v2370
    %v2429 = vmul.f32 %v2023, %v2371
    %v2430 = vmul.f32 %v2024, %v2372
    %v2431 = vmul.f32 %v2025, %v2373
    %v2432 = vmul.f32 %v2026, %v2374
    %v2433 = vmul.f32 %v2027, %v2375
    %v2434 = vmul.f32 %v2028, %v2376
    %v2435 = vmul.f32 %v2029, %v2377
    %v2436 = vmul.f32 %v2030, %v2378
    %v2437 = vmul.f32 %v2031, %v2379
    %v2438 = vmul.f32 %v2032, %v2380
    %v2439 = vmul.f32 %v2033, %v2381
    %v2440 = vmul.f32 %v2034, %v2382
    %v2441 = vmul.f32 %v2035, %v2383
    %v2442 = vmul.f32 %v2036, %v2384
    %v2443 = vmul.f32 %v2037, %v2385
    %v2444 = vmul.f32 %v2038, %v2386
    %v2445 = vmul.f32 %v2039, %v2387
    %v2446 = vmul.f32 %v2040, %v2388
    %v2447 = vmul.f32 %v2041, %v2389
    %v2448 = vmul.f32 %v2042, %v2390
    %v2449 = vmul.f32 %v2043, %v2391
    %v2450 = vmul.f32 %v2044, %v2392
    %v2451 = vmul.f32 %v2045, %v2393
    %v2452 = vmul.f32 %v2046, %v2394
    %v2453 = vsub.f32 %v2395, %v2424
    %v2454 = vsub.f32 %v2396, %v2425
    %v2455 = vsub.f32 %v2397, %v2426
    %v2456 = vsub.f32 %v2398, %v2427
    %v2457 = vsub.f32 %v2399, %v2428
    %v2458 = vsub.f32 %v2400, %v2429
    %v2459 = vsub.f32 %v2401, %v2430
    %v2460 = vsub.f32 %v2402, %v2431
    %v2461 = vsub.f32 %v2403, %v2432
    %v2462 = vsub.f32 %v2404, %v2433
    %v2463 = vsub.f32 %v2405, %v2434
    %v2464 = vsub.f32 %v2406, %v2435
    %v2465 = vsub.f32 %v2407, %v2436
    %v2466 = vsub.f32 %v2408, %v2437
    %v2467 = vsub.f32 %v2409, %v2438
    %v2468 = vsub.f32 %v2410, %v2439
    %v2469 = vsub.f32 %v2411, %v2440
    %v2470 = vsub.f32 %v2412, %v2441
    %v2471 = vsub.f32 %v2413, %v2442
    %v2472 = vsub.f32 %v2414, %v2443
    %v2473 = vsub.f32 %v2415, %v2444
    %v2474 = vsub.f32 %v2416, %v2445
    %v2475 = vsub.f32 %v2417, %v2446
    %v2476 = vsub.f32 %v2418, %v2447
    %v2477 = vsub.f32 %v2419, %v2448
    %v2478 = vsub.f32 %v2420, %v2449
    %v2479 = vsub.f32 %v2421, %v2450
    %v2480 = vsub.f32 %v2422, %v2451
    %v2481 = vsub.f32 %v2423, %v2452
    %2483 = vset.pattern.permute.xlu0 0
    %2484 = vperm.xlu0 %2483, %v2366
    %v2485 = vpop.permute.xlu0 %2484
    %2488 = vset.pattern.permute.xlu0 0
    %2489 = vperm.xlu0 %2488, %v2367
    %v2490 = vpop.permute.xlu0 %2489
    %2493 = vset.pattern.permute.xlu0 0
    %2494 = vperm.xlu0 %2493, %v2368
    %v2495 = vpop.permute.xlu0 %2494
    %2498 = vset.pattern.permute.xlu0 0
    %2499 = vperm.xlu0 %2498, %v2369
    %v2500 = vpop.permute.xlu0 %2499
    %2503 = vset.pattern.permute.xlu0 0
    %2504 = vperm.xlu0 %2503, %v2370
    %v2505 = vpop.permute.xlu0 %2504
    %2508 = vset.pattern.permute.xlu0 0
    %2509 = vperm.xlu0 %2508, %v2371
    %v2510 = vpop.permute.xlu0 %2509
    %2513 = vset.pattern.permute.xlu0 0
    %2514 = vperm.xlu0 %2513, %v2372
    %v2515 = vpop.permute.xlu0 %2514
    %2518 = vset.pattern.permute.xlu0 0
    %2519 = vperm.xlu0 %2518, %v2373
    %v2520 = vpop.permute.xlu0 %2519
    %2523 = vset.pattern.permute.xlu0 0
    %2524 = vperm.xlu0 %2523, %v2374
    %v2525 = vpop.permute.xlu0 %2524
    %2528 = vset.pattern.permute.xlu0 0
    %2529 = vperm.xlu0 %2528, %v2375
    %v2530 = vpop.permute.xlu0 %2529
    %2533 = vset.pattern.permute.xlu0 0
    %2534 = vperm.xlu0 %2533, %v2376
    %v2535 = vpop.permute.xlu0 %2534
    %2538 = vset.pattern.permute.xlu0 0
    %2539 = vperm.xlu0 %2538, %v2377
    %v2540 = vpop.permute.xlu0 %2539
    %2543 = vset.pattern.permute.xlu0 0
    %2544 = vperm.xlu0 %2543, %v2378
    %v2545 = vpop.permute.xlu0 %2544
    %2548 = vset.pattern.permute.xlu0 0
    %2549 = vperm.xlu0 %2548, %v2379
    %v2550 = vpop.permute.xlu0 %2549
    %2553 = vset.pattern.permute.xlu0 0
    %2554 = vperm.xlu0 %2553, %v2380
    %v2555 = vpop.permute.xlu0 %2554
    %2558 = vset.pattern.permute.xlu0 0
    %2559 = vperm.xlu0 %2558, %v2381
    %v2560 = vpop.permute.xlu0 %2559
    %2563 = vset.pattern.permute.xlu0 0
    %2564 = vperm.xlu0 %2563, %v2382
    %v2565 = vpop.permute.xlu0 %2564
    %2568 = vset.pattern.permute.xlu0 0
    %2569 = vperm.xlu0 %2568, %v2383
    %v2570 = vpop.permute.xlu0 %2569
    %2573 = vset.pattern.permute.xlu0 0
    %2574 = vperm.xlu0 %2573, %v2384
    %v2575 = vpop.permute.xlu0 %2574
    %2578 = vset.pattern.permute.xlu0 0
    %2579 = vperm.xlu0 %2578, %v2385
    %v2580 = vpop.permute.xlu0 %2579
    %2583 = vset.pattern.permute.xlu0 0
    %2584 = vperm.xlu0 %2583, %v2386
    %v2585 = vpop.permute.xlu0 %2584
    %2588 = vset.pattern.permute.xlu0 0
    %2589 = vperm.xlu0 %2588, %v2387
    %v2590 = vpop.permute.xlu0 %2589
    %2593 = vset.pattern.permute.xlu0 0
    %2594 = vperm.xlu0 %2593, %v2388
    %v2595 = vpop.permute.xlu0 %2594
    %2598 = vset.pattern.permute.xlu0 0
    %2599 = vperm.xlu0 %2598, %v2389
    %v2600 = vpop.permute.xlu0 %2599
    %2603 = vset.pattern.permute.xlu0 0
    %2604 = vperm.xlu0 %2603, %v2390
    %v2605 = vpop.permute.xlu0 %2604
    %2608 = vset.pattern.permute.xlu0 0
    %2609 = vperm.xlu0 %2608, %v2391
    %v2610 = vpop.permute.xlu0 %2609
    %2613 = vset.pattern.permute.xlu0 0
    %2614 = vperm.xlu0 %2613, %v2392
    %v2615 = vpop.permute.xlu0 %2614
    %2618 = vset.pattern.permute.xlu0 0
    %2619 = vperm.xlu0 %2618, %v2393
    %v2620 = vpop.permute.xlu0 %2619
    %2623 = vset.pattern.permute.xlu0 0
    %2624 = vperm.xlu0 %2623, %v2394
    %v2625 = vpop.permute.xlu0 %2624
    %v2627 = vmul.f32 %v2047, %v2485
    %v2628 = vmul.f32 %v2048, %v2490
    %v2629 = vmul.f32 %v2049, %v2495
    %v2630 = vmul.f32 %v2050, %v2500
    %v2631 = vmul.f32 %v2051, %v2505
    %v2632 = vmul.f32 %v2052, %v2510
    %v2633 = vmul.f32 %v2053, %v2515
    %v2634 = vmul.f32 %v2054, %v2520
    %v2635 = vmul.f32 %v2055, %v2525
    %v2636 = vmul.f32 %v2056, %v2530
    %v2637 = vmul.f32 %v2057, %v2535
    %v2638 = vmul.f32 %v2058, %v2540
    %v2639 = vmul.f32 %v2059, %v2545
    %v2640 = vmul.f32 %v2060, %v2550
    %v2641 = vmul.f32 %v2061, %v2555
    %v2642 = vmul.f32 %v2062, %v2560
    %v2643 = vmul.f32 %v2063, %v2565
    %v2644 = vmul.f32 %v2064, %v2570
    %v2645 = vmul.f32 %v2065, %v2575
    %v2646 = vmul.f32 %v2066, %v2580
    %v2647 = vmul.f32 %v2067, %v2585
    %v2648 = vmul.f32 %v2068, %v2590
    %v2649 = vmul.f32 %v2069, %v2595
    %v2650 = vmul.f32 %v2070, %v2600
    %v2651 = vmul.f32 %v2071, %v2605
    %v2652 = vmul.f32 %v2072, %v2610
    %v2653 = vmul.f32 %v2073, %v2615
    %v2654 = vmul.f32 %v2074, %v2620
    %v2655 = vmul.f32 %v2075, %v2625
    %2657 = vset.pattern.permute.xlu0 0
    %2658 = vperm.xlu0 %2657, %v2453
    %v2659 = vpop.permute.xlu0 %2658
    %2662 = vset.pattern.permute.xlu0 0
    %2663 = vperm.xlu0 %2662, %v2454
    %v2664 = vpop.permute.xlu0 %2663
    %2667 = vset.pattern.permute.xlu0 0
    %2668 = vperm.xlu0 %2667, %v2455
    %v2669 = vpop.permute.xlu0 %2668
    %2672 = vset.pattern.permute.xlu0 0
    %2673 = vperm.xlu0 %2672, %v2456
    %v2674 = vpop.permute.xlu0 %2673
    %2677 = vset.pattern.permute.xlu0 0
    %2678 = vperm.xlu0 %2677, %v2457
    %v2679 = vpop.permute.xlu0 %2678
    %2682 = vset.pattern.permute.xlu0 0
    %2683 = vperm.xlu0 %2682, %v2458
    %v2684 = vpop.permute.xlu0 %2683
    %2687 = vset.pattern.permute.xlu0 0
    %2688 = vperm.xlu0 %2687, %v2459
    %v2689 = vpop.permute.xlu0 %2688
    %2692 = vset.pattern.permute.xlu0 0
    %2693 = vperm.xlu0 %2692, %v2460
    %v2694 = vpop.permute.xlu0 %2693
    %2697 = vset.pattern.permute.xlu0 0
    %2698 = vperm.xlu0 %2697, %v2461
    %v2699 = vpop.permute.xlu0 %2698
    %2702 = vset.pattern.permute.xlu0 0
    %2703 = vperm.xlu0 %2702, %v2462
    %v2704 = vpop.permute.xlu0 %2703
    %2707 = vset.pattern.permute.xlu0 0
    %2708 = vperm.xlu0 %2707, %v2463
    %v2709 = vpop.permute.xlu0 %2708
    %2712 = vset.pattern.permute.xlu0 0
    %2713 = vperm.xlu0 %2712, %v2464
    %v2714 = vpop.permute.xlu0 %2713
    %2717 = vset.pattern.permute.xlu0 0
    %2718 = vperm.xlu0 %2717, %v2465
    %v2719 = vpop.permute.xlu0 %2718
    %2722 = vset.pattern.permute.xlu0 0
    %2723 = vperm.xlu0 %2722, %v2466
    %v2724 = vpop.permute.xlu0 %2723
    %2727 = vset.pattern.permute.xlu0 0
    %2728 = vperm.xlu0 %2727, %v2467
    %v2729 = vpop.permute.xlu0 %2728
    %2732 = vset.pattern.permute.xlu0 0
    %2733 = vperm.xlu0 %2732, %v2468
    %v2734 = vpop.permute.xlu0 %2733
    %2737 = vset.pattern.permute.xlu0 0
    %2738 = vperm.xlu0 %2737, %v2469
    %v2739 = vpop.permute.xlu0 %2738
    %2742 = vset.pattern.permute.xlu0 0
    %2743 = vperm.xlu0 %2742, %v2470
    %v2744 = vpop.permute.xlu0 %2743
    %2747 = vset.pattern.permute.xlu0 0
    %2748 = vperm.xlu0 %2747, %v2471
    %v2749 = vpop.permute.xlu0 %2748
    %2752 = vset.pattern.permute.xlu0 0
    %2753 = vperm.xlu0 %2752, %v2472
    %v2754 = vpop.permute.xlu0 %2753
    %2757 = vset.pattern.permute.xlu0 0
    %2758 = vperm.xlu0 %2757, %v2473
    %v2759 = vpop.permute.xlu0 %2758
    %2762 = vset.pattern.permute.xlu0 0
    %2763 = vperm.xlu0 %2762, %v2474
    %v2764 = vpop.permute.xlu0 %2763
    %2767 = vset.pattern.permute.xlu0 0
    %2768 = vperm.xlu0 %2767, %v2475
    %v2769 = vpop.permute.xlu0 %2768
    %2772 = vset.pattern.permute.xlu0 0
    %2773 = vperm.xlu0 %2772, %v2476
    %v2774 = vpop.permute.xlu0 %2773
    %2777 = vset.pattern.permute.xlu0 0
    %2778 = vperm.xlu0 %2777, %v2477
    %v2779 = vpop.permute.xlu0 %2778
    %2782 = vset.pattern.permute.xlu0 0
    %2783 = vperm.xlu0 %2782, %v2478
    %v2784 = vpop.permute.xlu0 %2783
    %2787 = vset.pattern.permute.xlu0 0
    %2788 = vperm.xlu0 %2787, %v2479
    %v2789 = vpop.permute.xlu0 %2788
    %2792 = vset.pattern.permute.xlu0 0
    %2793 = vperm.xlu0 %2792, %v2480
    %v2794 = vpop.permute.xlu0 %2793
    %2797 = vset.pattern.permute.xlu0 0
    %2798 = vperm.xlu0 %2797, %v2481
    %v2799 = vpop.permute.xlu0 %2798
    %v2801 = vadd.f32 %v2627, %v2659
    %v2802 = vadd.f32 %v2628, %v2664
    %v2803 = vadd.f32 %v2629, %v2669
    %v2804 = vadd.f32 %v2630, %v2674
    %v2805 = vadd.f32 %v2631, %v2679
    %v2806 = vadd.f32 %v2632, %v2684
    %v2807 = vadd.f32 %v2633, %v2689
    %v2808 = vadd.f32 %v2634, %v2694
    %v2809 = vadd.f32 %v2635, %v2699
    %v2810 = vadd.f32 %v2636, %v2704
    %v2811 = vadd.f32 %v2637, %v2709
    %v2812 = vadd.f32 %v2638, %v2714
    %v2813 = vadd.f32 %v2639, %v2719
    %v2814 = vadd.f32 %v2640, %v2724
    %v2815 = vadd.f32 %v2641, %v2729
    %v2816 = vadd.f32 %v2642, %v2734
    %v2817 = vadd.f32 %v2643, %v2739
    %v2818 = vadd.f32 %v2644, %v2744
    %v2819 = vadd.f32 %v2645, %v2749
    %v2820 = vadd.f32 %v2646, %v2754
    %v2821 = vadd.f32 %v2647, %v2759
    %v2822 = vadd.f32 %v2648, %v2764
    %v2823 = vadd.f32 %v2649, %v2769
    %v2824 = vadd.f32 %v2650, %v2774
    %v2825 = vadd.f32 %v2651, %v2779
    %v2826 = vadd.f32 %v2652, %v2784
    %v2827 = vadd.f32 %v2653, %v2789
    %v2828 = vadd.f32 %v2654, %v2794
    %v2829 = vadd.f32 %v2655, %v2799
    %2830 = vst.msk [vmem:[%s4] sm:$0xff] %vm1872, %v2801
    %2831 = vst.msk [vmem:[%s4 + $0x8] sm:$0xff] %vm1872, %v2802
    %2832 = vst.msk [vmem:[%s4 + $0x10] sm:$0xff] %vm1872, %v2803
    %2833 = vst.msk [vmem:[%s4 + $0x18] sm:$0xff] %vm1872, %v2804
    %2834 = vst.msk [vmem:[%s4 + $0x20] sm:$0xff] %vm1872, %v2805
    %2835 = vst.msk [vmem:[%s4 + $0x28] sm:$0xff] %vm1872, %v2806
    %2836 = vst.msk [vmem:[%s4 + $0x30] sm:$0xff] %vm1872, %v2807
    %2837 = vst.msk [vmem:[%s4 + $0x38] sm:$0xff] %vm1872, %v2808
    %2838 = vst.msk [vmem:[%s4 + $0x40] sm:$0xff] %vm1872, %v2809
    %2839 = vst.msk [vmem:[%s4 + $0x48] sm:$0xff] %vm1872, %v2810
    %2840 = vst.msk [vmem:[%s4 + $0x50] sm:$0xff] %vm1872, %v2811
    %2841 = vst.msk [vmem:[%s4 + $0x58] sm:$0xff] %vm1872, %v2812
    %2842 = vst.msk [vmem:[%s4 + $0x60] sm:$0xff] %vm1872, %v2813
    %2843 = vst.msk [vmem:[%s4 + $0x68] sm:$0xff] %vm1872, %v2814
    %2844 = vst.msk [vmem:[%s4 + $0x70] sm:$0xff] %vm1872, %v2815
    %2845 = vst.msk [vmem:[%s4 + $0x78] sm:$0xff] %vm1872, %v2816
    %2846 = vst.msk [vmem:[%s4 + $0x80] sm:$0xff] %vm1872, %v2817
    %2847 = vst.msk [vmem:[%s4 + $0x88] sm:$0xff] %vm1872, %v2818
    %2848 = vst.msk [vmem:[%s4 + $0x90] sm:$0xff] %vm1872, %v2819
    %2849 = vst.msk [vmem:[%s4 + $0x98] sm:$0xff] %vm1872, %v2820
    %2850 = vst.msk [vmem:[%s4 + $0xa0] sm:$0xff] %vm1872, %v2821
    %2851 = vst.msk [vmem:[%s4 + $0xa8] sm:$0xff] %vm1872, %v2822
    %2852 = vst.msk [vmem:[%s4 + $0xb0] sm:$0xff] %vm1872, %v2823
    %2853 = vst.msk [vmem:[%s4 + $0xb8] sm:$0xff] %vm1872, %v2824
    %2854 = vst.msk [vmem:[%s4 + $0xc0] sm:$0xff] %vm1872, %v2825
    %2855 = vst.msk [vmem:[%s4 + $0xc8] sm:$0xff] %vm1872, %v2826
    %2856 = vst.msk [vmem:[%s4 + $0xd0] sm:$0xff] %vm1872, %v2827
    %2857 = vst.msk [vmem:[%s4 + $0xd8] sm:$0xff] %vm1872, %v2828
    %2858 = vst.msk [vmem:[%s4 + $0xe0] sm:$0xff] %vm1872, %v2829
    // Predicated region
    $region22: #{tpu_custom_call.1} parent=1 // pred_check
      _
    $region23: #{tpu_custom_call.1} parent=1 // pred_check_branch
      %2860 = sbr.rel (0) target = $region25
    $region24: #{tpu_custom_call.1} parent=1 // pred_region
      _
    $region25: #{tpu_custom_call.1} parent=1 // pred_fallthru
      _
    // Predicated region
    $region26: #{tpu_custom_call.1} parent=1 // pred_check
      _
    $region27: #{tpu_custom_call.1} parent=1 // pred_check_branch
      %2862 = sbr.rel (0) target = $region29
    $region28: #{tpu_custom_call.1} parent=1 // pred_region
      _
    $region29: #{tpu_custom_call.1} parent=1 // pred_fallthru
      _
    %2863 = vsyncpa [#allocation3], 1

</llo_original>
